<compile_context>
chip_gen: v6e
topology: v6e:2x2x1
jax: 0.10.0
libtpu: 0.0.40
codegen_flags: <defaults>
</compile_context>

<pallas_src>
import jax
import jax.numpy as jnp
from jax.experimental import pallas as pl
from jax.experimental.pallas import tpu as pltpu

NUM_LAYERS = 5


# ----------------------------- Pallas kernel --------------------------------

def _net_gin_kernel(a_ref, p_ref, x_ref, w_ref, b_ref, l_ref, out_ref):
    """One graph-batch of the NetGIN forward (one grid step).

    a_ref  : [N, N]       bf16  Â = A + (1+eps)·I  (eps = 0, identity folded in)
    p_ref  : [G, N]       bf16  mean-pool matrix (1/count entries)
    x_ref  : [N, D]       bf16  node features, zero-padded to D
    w_ref  : [2L, D, D]   bf16  (Wa_0, Wb_0, ..., Wa_4, Wb_4); Wa_0 row-padded
    b_ref  : [2L, D]      f32   (ba_0, bb_0, ..., ba_4, bb_4)
    l_ref  : [L, D, OUT]  bf16  heads L_1..L_5
    out_ref: [G, OUT]     f32
    """
    A = a_ref[...]                       # [N, N] bf16
    h = x_ref[...]                       # [N, D] bf16
    N, _ = h.shape
    OUT = l_ref.shape[-1]

    # Heads are applied in the node domain and pooled once at the end:
    #   sum_k (P @ h_k) @ L_k  ==  P @ (sum_k h_k @ L_k)
    s = jnp.zeros((N, OUT), jnp.float32)

    for k in range(NUM_LAYERS):
        wa = w_ref[2 * k]                        # [D, D] bf16
        wb = w_ref[2 * k + 1]                    # [D, D] bf16
        ba = b_ref[2 * k:2 * k + 1, :]           # [1, D] f32
        bb = b_ref[2 * k + 1:2 * k + 2, :]       # [1, D] f32

        # GIN aggregation:  Â @ h == (1+eps)*h + sum_{j in N(i)} h_j   (eps = 0)
        agg = jnp.dot(A, h, preferred_element_type=jnp.float32)        # [N, D] f32

        # nn_k = Linear -> ReLU -> Linear  (bf16 MXU operands, f32 accumulate)
        z = jnp.dot(agg.astype(jnp.bfloat16), wa,
                    preferred_element_type=jnp.float32) + ba
        z = jnp.maximum(z, 0.0)
        z = jnp.dot(z.astype(jnp.bfloat16), wb,
                    preferred_element_type=jnp.float32) + bb

        # x_k = F.relu(conv_k(x_{k-1}))
        h = jnp.maximum(z, 0.0).astype(jnp.bfloat16)                    # [N, D] bf16

        # Deferred head: accumulate h_k @ L_k in vregs (no VMEM scratch).
        s = s + jnp.dot(h, l_ref[k], preferred_element_type=jnp.float32)

    # out = sigmoid( P @ sum_k h_k @ L_k )  — single pure-bf16 pooling matmul.
    out_ref[...] = jax.nn.sigmoid(
        jnp.dot(p_ref[...], s.astype(jnp.bfloat16),
                preferred_element_type=jnp.float32))


def net_gin_forward(a_hat, pool, x_pad, w_stack, b_stack, l_stack):
    """a_hat [B,N,N] bf16, pool [B,G,N] bf16, x_pad [B,N,D] bf16,
    w_stack [2L,D,D] bf16, b_stack [2L,D] f32, l_stack [L,D,OUT] bf16."""
    B, N, _ = a_hat.shape
    G = pool.shape[1]
    D = x_pad.shape[-1]
    OUT = l_stack.shape[-1]

    flops = int(2 * B * (NUM_LAYERS * (N * N * D + 2 * N * D * D + N * D * OUT)
                         + G * N * OUT))
    bytes_accessed = int(a_hat.size * 2 + pool.size * 2 + x_pad.size * 2
                         + w_stack.size * 2 + b_stack.size * 4
                         + l_stack.size * 2 + B * G * OUT * 4)
    cost = pl.CostEstimate(flops=flops,
                           transcendentals=int(B * G * OUT),
                           bytes_accessed=bytes_accessed)

    return pl.pallas_call(
        _net_gin_kernel,
        out_shape=jax.ShapeDtypeStruct((B, G, OUT), jnp.float32),
        grid_spec=pltpu.PrefetchScalarGridSpec(
            num_scalar_prefetch=0,
            grid=(B,),
            in_specs=[
                pl.BlockSpec((pl.Squeezed(), N, N), lambda b: (b, 0, 0)),
                pl.BlockSpec((pl.Squeezed(), G, N), lambda b: (b, 0, 0)),
                pl.BlockSpec((pl.Squeezed(), N, D), lambda b: (b, 0, 0)),
                # Weights / biases / heads are grid-invariant (stay resident).
                pl.BlockSpec((2 * NUM_LAYERS, D, D), lambda b: (0, 0, 0)),
                pl.BlockSpec((2 * NUM_LAYERS, D), lambda b: (0, 0)),
                pl.BlockSpec((NUM_LAYERS, D, OUT), lambda b: (0, 0, 0)),
            ],
            out_specs=pl.BlockSpec((pl.Squeezed(), G, OUT), lambda b: (b, 0, 0)),
        ),
        compiler_params=pltpu.CompilerParams(
            dimension_semantics=("parallel",)),
        cost_estimate=cost,
    )(a_hat, pool, x_pad, w_stack, b_stack, l_stack)


# -------------------------- plain-JAX references ------------------------------

def net_gin_reference_f32(A, P, x, params):
    """Full-precision f32 reference of the original torch module (one batch)."""
    hp = jax.lax.Precision.HIGHEST
    h = x
    acc = 0.0
    for (wa, ba, wb, bb, lk) in params:
        agg = jnp.dot(A, h, precision=hp) + h
        z = jnp.maximum(jnp.dot(agg, wa, precision=hp) + ba, 0.0)
        z = jnp.dot(z, wb, precision=hp) + bb
        h = jnp.maximum(z, 0.0)
        m = jnp.dot(P, h, precision=hp)
        acc = acc + jnp.dot(m, lk, precision=hp)
    return jax.nn.sigmoid(acc)


def net_gin_reference_packed(a_hat, pool_bf16, x_pad, w_stack, b_stack, l_stack):
    """Plain-JAX emulation of the kernel's packed bf16/f32 arithmetic (one batch)."""
    h = x_pad
    N = h.shape[0]
    OUT = l_stack.shape[-1]
    s = jnp.zeros((N, OUT), jnp.float32)
    for k in range(NUM_LAYERS):
        wa, wb = w_stack[2 * k], w_stack[2 * k + 1]
        ba = b_stack[2 * k][None, :]
        bb = b_stack[2 * k + 1][None, :]
        agg = jnp.dot(a_hat, h, preferred_element_type=jnp.float32)
        z = jnp.dot(agg.astype(jnp.bfloat16), wa,
                    preferred_element_type=jnp.float32) + ba
        z = jnp.maximum(z, 0.0)
        z = jnp.dot(z.astype(jnp.bfloat16), wb,
                    preferred_element_type=jnp.float32) + bb
        h = jnp.maximum(z, 0.0).astype(jnp.bfloat16)
        s = s + jnp.dot(h, l_stack[k], preferred_element_type=jnp.float32)
    return jax.nn.sigmoid(
        jnp.dot(pool_bf16, s.astype(jnp.bfloat16),
                preferred_element_type=jnp.float32))


# --------------------------------- main --------------------------------------

if __name__ == "__main__":
    # Small, forward-consistent shapes.
    B = 4             # independent graph-batches (the new parallel grid axis)
    N = 64            # nodes per graph-batch
    E = 256           # edges per graph-batch
    NUM_FEATURES = 16
    DIM = 32
    OUTPUT_SIZE = 8
    G = 8             # graphs per batch (N // G nodes each)

    key = jax.random.PRNGKey(0)
    k_data, k_w = jax.random.split(key)

    # batch vector / mean-pool matrix (same structure for every graph-batch).
    batch = jnp.arange(N, dtype=jnp.int32) // (N // G)       # [N]
    onehot = (batch[None, :] == jnp.arange(G)[:, None]).astype(jnp.float32)
    counts = jnp.maximum(onehot.sum(axis=1, keepdims=True), 1.0)
    P = onehot / counts                                       # [G, N] f32

    # Per-batch raw graph inputs (as the torch module would receive them).
    A_list, x_list = [], []
    for bk in jax.random.split(k_data, B):
        k_x, k_src, k_dst = jax.random.split(bk, 3)
        x = jax.random.normal(k_x, (N, NUM_FEATURES), dtype=jnp.float32)
        src = jax.random.randint(k_src, (E,), 0, N)
        dst = jax.random.randint(k_dst, (E,), 0, N)
        # Dense adjacency with edge multiplicity (messages flow src -> dst).
        A = jnp.zeros((N, N), jnp.float32).at[dst, src].add(1.0)
        A_list.append(A)
        x_list.append(x)
    A_all = jnp.stack(A_list)                                 # [B, N, N] f32
    x_all = jnp.stack(x_list)                                 # [B, N, F] f32

    # Deterministic parameter init (shapes dictated by __init__), shared over B.
    def init_layer(k, in_dim):
        k1, k2, k3, k4, k5 = jax.random.split(k, 5)
        wa = jax.random.normal(k1, (in_dim, DIM), jnp.float32) * 0.15
        ba = jax.random.normal(k2, (1, DIM), jnp.float32) * 0.1
        wb = jax.random.normal(k3, (DIM, DIM), jnp.float32) * 0.15
        bb = jax.random.normal(k4, (1, DIM), jnp.float32) * 0.1
        lk = jax.random.normal(k5, (DIM, OUTPUT_SIZE), jnp.float32) * 0.2
        return (wa, ba, wb, bb, lk)

    layer_keys = jax.random.split(k_w, NUM_LAYERS)
    params = [init_layer(layer_keys[0], NUM_FEATURES)]
    params += [init_layer(layer_keys[i], DIM) for i in range(1, NUM_LAYERS)]

    # ---- pack / precondition kernel operands ----
    # Â = A + (1+eps)·I (eps = 0): folds the "+ h" self term into the matmul.
    a_hat = (A_all + jnp.eye(N, dtype=jnp.float32)[None]).astype(jnp.bfloat16)

    # Zero-pad input features to DIM so every layer shares one weight shape.
    x_pad = (jnp.zeros((B, N, DIM), jnp.float32)
             .at[:, :, :NUM_FEATURES].set(x_all)).astype(jnp.bfloat16)

    # Pure-bf16 pooling operand.
    pool = jnp.broadcast_to(P[None], (B, G, N)).astype(jnp.bfloat16)

    w_list, b_list = [], []
    for i, (wa, ba, wb, bb, lk) in enumerate(params):
        if i == 0:  # zero-pad layer-0 Wa rows to DIM (padded input cols are 0)
            wa = jnp.zeros((DIM, DIM), jnp.float32).at[:NUM_FEATURES, :].set(wa)
        w_list += [wa, wb]
        b_list += [ba[0], bb[0]]
    w_stack = jnp.stack(w_list).astype(jnp.bfloat16)            # [10, D, D] bf16
    b_stack = jnp.stack(b_list)                                  # [10, D]    f32
    l_stack = jnp.stack([p[4] for p in params]).astype(jnp.bfloat16)  # [5, D, OUT]

    out = jax.block_until_ready(
        net_gin_forward(a_hat, pool, x_pad, w_stack, b_stack, l_stack))
    assert out.shape == (B, G, OUTPUT_SIZE)

    for b in range(B):
        # Structural check: exact emulation of the kernel's packed arithmetic.
        ref_emul = net_gin_reference_packed(
            a_hat[b], pool[b], x_pad[b], w_stack, b_stack, l_stack)
        assert jnp.allclose(out[b], ref_emul, atol=5e-3, rtol=5e-3), (b, out[b], ref_emul)

        # Semantic check: f32 reference of the original module (bf16 tolerance).
        ref_f32 = net_gin_reference_f32(A_all[b], P, x_all[b], params)
        assert jnp.allclose(out[b], ref_f32, atol=5e-2, rtol=5e-2), (b, out[b], ref_f32)

    print("KERNEL_OK")
</pallas_src>

<mosaic_0001>
module attributes {stable_mosaic.version = 11 : i64} {
  func.func @_net_gin_kernel(%arg0: i32, %arg1: memref<1x64x64xbf16, #tpu.memory_space<vmem>>, %arg2: memref<1x8x64xbf16, #tpu.memory_space<vmem>>, %arg3: memref<1x64x32xbf16, #tpu.memory_space<vmem>>, %arg4: memref<10x32x32xbf16, #tpu.memory_space<vmem>>, %arg5: memref<10x32xf32, #tpu.memory_space<vmem>>, %arg6: memref<5x32x8xbf16, #tpu.memory_space<vmem>>, %arg7: memref<1x8x8xf32, #tpu.memory_space<vmem>>) attributes {dimension_semantics = [#tpu.dimension_semantics<parallel>], iteration_bounds = array<i64: 4>, scalar_prefetch = 0 : i64, scratch_operands = 0 : i64, tpu.core_type = #tpu.core_type<tc>, window_params = [{transform_indices = @transform_0, window_bounds = array<i64: 1, 64, 64>}, {transform_indices = @transform_1, window_bounds = array<i64: 1, 8, 64>}, {transform_indices = @transform_2, window_bounds = array<i64: 1, 64, 32>}, {pipeline_mode = #tpu.pipeline_mode<synchronous>, transform_indices = @transform_3, window_bounds = array<i64: 10, 32, 32>}, {pipeline_mode = #tpu.pipeline_mode<synchronous>, transform_indices = @transform_4, window_bounds = array<i64: 10, 32>}, {pipeline_mode = #tpu.pipeline_mode<synchronous>, transform_indices = @transform_5, window_bounds = array<i64: 5, 32, 8>}, {transform_indices = @transform_6, window_bounds = array<i64: 1, 8, 8>}]} {
    %c0 = arith.constant 0 : index
    %c0_0 = arith.constant 0 : index
    %c0_1 = arith.constant 0 : index
    %0 = vector.load %arg1[%c0, %c0_0, %c0_1] : memref<1x64x64xbf16, #tpu.memory_space<vmem>>, vector<1x64x64xbf16>
    %1 = vector.shape_cast %0 : vector<1x64x64xbf16> to vector<64x64xbf16>
    %c0_2 = arith.constant 0 : index
    %c0_3 = arith.constant 0 : index
    %c0_4 = arith.constant 0 : index
    %2 = vector.load %arg3[%c0_2, %c0_3, %c0_4] : memref<1x64x32xbf16, #tpu.memory_space<vmem>>, vector<1x64x32xbf16>
    %3 = vector.shape_cast %2 : vector<1x64x32xbf16> to vector<64x32xbf16>
    %cst = arith.constant 0.000000e+00 : f32
    %4 = vector.broadcast %cst : f32 to vector<64x8xf32>
    %c0_5 = arith.constant 0 : index
    %c0_6 = arith.constant 0 : index
    %c0_7 = arith.constant 0 : index
    %5 = vector.load %arg4[%c0_5, %c0_6, %c0_7] : memref<10x32x32xbf16, #tpu.memory_space<vmem>>, vector<1x32x32xbf16>
    %6 = vector.shape_cast %5 : vector<1x32x32xbf16> to vector<32x32xbf16>
    %c1 = arith.constant 1 : index
    %c0_8 = arith.constant 0 : index
    %c0_9 = arith.constant 0 : index
    %7 = vector.load %arg4[%c1, %c0_8, %c0_9] : memref<10x32x32xbf16, #tpu.memory_space<vmem>>, vector<1x32x32xbf16>
    %8 = vector.shape_cast %7 : vector<1x32x32xbf16> to vector<32x32xbf16>
    %c0_10 = arith.constant 0 : index
    %c0_11 = arith.constant 0 : index
    %9 = vector.load %arg5[%c0_10, %c0_11] : memref<10x32xf32, #tpu.memory_space<vmem>>, vector<1x32xf32>
    %c1_12 = arith.constant 1 : index
    %c0_13 = arith.constant 0 : index
    %10 = vector.load %arg5[%c1_12, %c0_13] : memref<10x32xf32, #tpu.memory_space<vmem>>, vector<1x32xf32>
    %cst_14 = arith.constant dense<0.000000e+00> : vector<64x32xf32>
    %11 = tpu.matmul %1, %3, %cst_14 {dimension_numbers = #tpu.dot_dimension_numbers<[1], [0], [0], [1], [0, 0, 1, 1], [], []>} : vector<64x64xbf16>, vector<64x32xbf16>, vector<64x32xf32> -> vector<64x32xf32>
    %12 = arith.truncf %11 : vector<64x32xf32> to vector<64x32xbf16>
    %cst_15 = arith.constant dense<0.000000e+00> : vector<64x32xf32>
    %13 = tpu.matmul %12, %6, %cst_15 {dimension_numbers = #tpu.dot_dimension_numbers<[1], [0], [0], [1], [0, 0, 1, 1], [], []>} : vector<64x32xbf16>, vector<32x32xbf16>, vector<64x32xf32> -> vector<64x32xf32>
    %14 = vector.broadcast %9 : vector<1x32xf32> to vector<64x32xf32>
    %15 = arith.addf %13, %14 : vector<64x32xf32>
    %cst_16 = arith.constant 0.000000e+00 : f32
    %16 = vector.broadcast %cst_16 : f32 to vector<64x32xf32>
    %17 = arith.maximumf %15, %16 : vector<64x32xf32>
    %18 = arith.truncf %17 : vector<64x32xf32> to vector<64x32xbf16>
    %cst_17 = arith.constant dense<0.000000e+00> : vector<64x32xf32>
    %19 = tpu.matmul %18, %8, %cst_17 {dimension_numbers = #tpu.dot_dimension_numbers<[1], [0], [0], [1], [0, 0, 1, 1], [], []>} : vector<64x32xbf16>, vector<32x32xbf16>, vector<64x32xf32> -> vector<64x32xf32>
    %20 = vector.broadcast %10 : vector<1x32xf32> to vector<64x32xf32>
    %21 = arith.addf %19, %20 : vector<64x32xf32>
    %cst_18 = arith.constant 0.000000e+00 : f32
    %22 = vector.broadcast %cst_18 : f32 to vector<64x32xf32>
    %23 = arith.maximumf %21, %22 : vector<64x32xf32>
    %24 = arith.truncf %23 : vector<64x32xf32> to vector<64x32xbf16>
    %c0_19 = arith.constant 0 : index
    %c0_20 = arith.constant 0 : index
    %c0_21 = arith.constant 0 : index
    %25 = vector.load %arg6[%c0_19, %c0_20, %c0_21] : memref<5x32x8xbf16, #tpu.memory_space<vmem>>, vector<1x32x8xbf16>
    %26 = vector.shape_cast %25 : vector<1x32x8xbf16> to vector<32x8xbf16>
    %cst_22 = arith.constant dense<0.000000e+00> : vector<64x8xf32>
    %27 = tpu.matmul %24, %26, %cst_22 {dimension_numbers = #tpu.dot_dimension_numbers<[1], [0], [0], [1], [0, 0, 1, 1], [], []>} : vector<64x32xbf16>, vector<32x8xbf16>, vector<64x8xf32> -> vector<64x8xf32>
    %28 = arith.addf %4, %27 : vector<64x8xf32>
    %c2 = arith.constant 2 : index
    %c0_23 = arith.constant 0 : index
    %c0_24 = arith.constant 0 : index
    %29 = vector.load %arg4[%c2, %c0_23, %c0_24] : memref<10x32x32xbf16, #tpu.memory_space<vmem>>, vector<1x32x32xbf16>
    %30 = vector.shape_cast %29 : vector<1x32x32xbf16> to vector<32x32xbf16>
    %c3 = arith.constant 3 : index
    %c0_25 = arith.constant 0 : index
    %c0_26 = arith.constant 0 : index
    %31 = vector.load %arg4[%c3, %c0_25, %c0_26] : memref<10x32x32xbf16, #tpu.memory_space<vmem>>, vector<1x32x32xbf16>
    %32 = vector.shape_cast %31 : vector<1x32x32xbf16> to vector<32x32xbf16>
    %c2_27 = arith.constant 2 : index
    %c0_28 = arith.constant 0 : index
    %33 = vector.load %arg5[%c2_27, %c0_28] : memref<10x32xf32, #tpu.memory_space<vmem>>, vector<1x32xf32>
    %c3_29 = arith.constant 3 : index
    %c0_30 = arith.constant 0 : index
    %34 = vector.load %arg5[%c3_29, %c0_30] : memref<10x32xf32, #tpu.memory_space<vmem>>, vector<1x32xf32>
    %cst_31 = arith.constant dense<0.000000e+00> : vector<64x32xf32>
    %35 = tpu.matmul %1, %24, %cst_31 {dimension_numbers = #tpu.dot_dimension_numbers<[1], [0], [0], [1], [0, 0, 1, 1], [], []>} : vector<64x64xbf16>, vector<64x32xbf16>, vector<64x32xf32> -> vector<64x32xf32>
    %36 = arith.truncf %35 : vector<64x32xf32> to vector<64x32xbf16>
    %cst_32 = arith.constant dense<0.000000e+00> : vector<64x32xf32>
    %37 = tpu.matmul %36, %30, %cst_32 {dimension_numbers = #tpu.dot_dimension_numbers<[1], [0], [0], [1], [0, 0, 1, 1], [], []>} : vector<64x32xbf16>, vector<32x32xbf16>, vector<64x32xf32> -> vector<64x32xf32>
    %38 = vector.broadcast %33 : vector<1x32xf32> to vector<64x32xf32>
    %39 = arith.addf %37, %38 : vector<64x32xf32>
    %cst_33 = arith.constant 0.000000e+00 : f32
    %40 = vector.broadcast %cst_33 : f32 to vector<64x32xf32>
    %41 = arith.maximumf %39, %40 : vector<64x32xf32>
    %42 = arith.truncf %41 : vector<64x32xf32> to vector<64x32xbf16>
    %cst_34 = arith.constant dense<0.000000e+00> : vector<64x32xf32>
    %43 = tpu.matmul %42, %32, %cst_34 {dimension_numbers = #tpu.dot_dimension_numbers<[1], [0], [0], [1], [0, 0, 1, 1], [], []>} : vector<64x32xbf16>, vector<32x32xbf16>, vector<64x32xf32> -> vector<64x32xf32>
    %44 = vector.broadcast %34 : vector<1x32xf32> to vector<64x32xf32>
    %45 = arith.addf %43, %44 : vector<64x32xf32>
    %cst_35 = arith.constant 0.000000e+00 : f32
    %46 = vector.broadcast %cst_35 : f32 to vector<64x32xf32>
    %47 = arith.maximumf %45, %46 : vector<64x32xf32>
    %48 = arith.truncf %47 : vector<64x32xf32> to vector<64x32xbf16>
    %c1_36 = arith.constant 1 : index
    %c0_37 = arith.constant 0 : index
    %c0_38 = arith.constant 0 : index
    %49 = vector.load %arg6[%c1_36, %c0_37, %c0_38] : memref<5x32x8xbf16, #tpu.memory_space<vmem>>, vector<1x32x8xbf16>
    %50 = vector.shape_cast %49 : vector<1x32x8xbf16> to vector<32x8xbf16>
    %cst_39 = arith.constant dense<0.000000e+00> : vector<64x8xf32>
    %51 = tpu.matmul %48, %50, %cst_39 {dimension_numbers = #tpu.dot_dimension_numbers<[1], [0], [0], [1], [0, 0, 1, 1], [], []>} : vector<64x32xbf16>, vector<32x8xbf16>, vector<64x8xf32> -> vector<64x8xf32>
    %52 = arith.addf %28, %51 : vector<64x8xf32>
    %c4 = arith.constant 4 : index
    %c0_40 = arith.constant 0 : index
    %c0_41 = arith.constant 0 : index
    %53 = vector.load %arg4[%c4, %c0_40, %c0_41] : memref<10x32x32xbf16, #tpu.memory_space<vmem>>, vector<1x32x32xbf16>
    %54 = vector.shape_cast %53 : vector<1x32x32xbf16> to vector<32x32xbf16>
    %c5 = arith.constant 5 : index
    %c0_42 = arith.constant 0 : index
    %c0_43 = arith.constant 0 : index
    %55 = vector.load %arg4[%c5, %c0_42, %c0_43] : memref<10x32x32xbf16, #tpu.memory_space<vmem>>, vector<1x32x32xbf16>
    %56 = vector.shape_cast %55 : vector<1x32x32xbf16> to vector<32x32xbf16>
    %c4_44 = arith.constant 4 : index
    %c0_45 = arith.constant 0 : index
    %57 = vector.load %arg5[%c4_44, %c0_45] : memref<10x32xf32, #tpu.memory_space<vmem>>, vector<1x32xf32>
    %c5_46 = arith.constant 5 : index
    %c0_47 = arith.constant 0 : index
    %58 = vector.load %arg5[%c5_46, %c0_47] : memref<10x32xf32, #tpu.memory_space<vmem>>, vector<1x32xf32>
    %cst_48 = arith.constant dense<0.000000e+00> : vector<64x32xf32>
    %59 = tpu.matmul %1, %48, %cst_48 {dimension_numbers = #tpu.dot_dimension_numbers<[1], [0], [0], [1], [0, 0, 1, 1], [], []>} : vector<64x64xbf16>, vector<64x32xbf16>, vector<64x32xf32> -> vector<64x32xf32>
    %60 = arith.truncf %59 : vector<64x32xf32> to vector<64x32xbf16>
    %cst_49 = arith.constant dense<0.000000e+00> : vector<64x32xf32>
    %61 = tpu.matmul %60, %54, %cst_49 {dimension_numbers = #tpu.dot_dimension_numbers<[1], [0], [0], [1], [0, 0, 1, 1], [], []>} : vector<64x32xbf16>, vector<32x32xbf16>, vector<64x32xf32> -> vector<64x32xf32>
    %62 = vector.broadcast %57 : vector<1x32xf32> to vector<64x32xf32>
    %63 = arith.addf %61, %62 : vector<64x32xf32>
    %cst_50 = arith.constant 0.000000e+00 : f32
    %64 = vector.broadcast %cst_50 : f32 to vector<64x32xf32>
    %65 = arith.maximumf %63, %64 : vector<64x32xf32>
    %66 = arith.truncf %65 : vector<64x32xf32> to vector<64x32xbf16>
    %cst_51 = arith.constant dense<0.000000e+00> : vector<64x32xf32>
    %67 = tpu.matmul %66, %56, %cst_51 {dimension_numbers = #tpu.dot_dimension_numbers<[1], [0], [0], [1], [0, 0, 1, 1], [], []>} : vector<64x32xbf16>, vector<32x32xbf16>, vector<64x32xf32> -> vector<64x32xf32>
    %68 = vector.broadcast %58 : vector<1x32xf32> to vector<64x32xf32>
    %69 = arith.addf %67, %68 : vector<64x32xf32>
    %cst_52 = arith.constant 0.000000e+00 : f32
    %70 = vector.broadcast %cst_52 : f32 to vector<64x32xf32>
    %71 = arith.maximumf %69, %70 : vector<64x32xf32>
    %72 = arith.truncf %71 : vector<64x32xf32> to vector<64x32xbf16>
    %c2_53 = arith.constant 2 : index
    %c0_54 = arith.constant 0 : index
    %c0_55 = arith.constant 0 : index
    %73 = vector.load %arg6[%c2_53, %c0_54, %c0_55] : memref<5x32x8xbf16, #tpu.memory_space<vmem>>, vector<1x32x8xbf16>
    %74 = vector.shape_cast %73 : vector<1x32x8xbf16> to vector<32x8xbf16>
    %cst_56 = arith.constant dense<0.000000e+00> : vector<64x8xf32>
    %75 = tpu.matmul %72, %74, %cst_56 {dimension_numbers = #tpu.dot_dimension_numbers<[1], [0], [0], [1], [0, 0, 1, 1], [], []>} : vector<64x32xbf16>, vector<32x8xbf16>, vector<64x8xf32> -> vector<64x8xf32>
    %76 = arith.addf %52, %75 : vector<64x8xf32>
    %c6 = arith.constant 6 : index
    %c0_57 = arith.constant 0 : index
    %c0_58 = arith.constant 0 : index
    %77 = vector.load %arg4[%c6, %c0_57, %c0_58] : memref<10x32x32xbf16, #tpu.memory_space<vmem>>, vector<1x32x32xbf16>
    %78 = vector.shape_cast %77 : vector<1x32x32xbf16> to vector<32x32xbf16>
    %c7 = arith.constant 7 : index
    %c0_59 = arith.constant 0 : index
    %c0_60 = arith.constant 0 : index
    %79 = vector.load %arg4[%c7, %c0_59, %c0_60] : memref<10x32x32xbf16, #tpu.memory_space<vmem>>, vector<1x32x32xbf16>
    %80 = vector.shape_cast %79 : vector<1x32x32xbf16> to vector<32x32xbf16>
    %c6_61 = arith.constant 6 : index
    %c0_62 = arith.constant 0 : index
    %81 = vector.load %arg5[%c6_61, %c0_62] : memref<10x32xf32, #tpu.memory_space<vmem>>, vector<1x32xf32>
    %c7_63 = arith.constant 7 : index
    %c0_64 = arith.constant 0 : index
    %82 = vector.load %arg5[%c7_63, %c0_64] : memref<10x32xf32, #tpu.memory_space<vmem>>, vector<1x32xf32>
    %cst_65 = arith.constant dense<0.000000e+00> : vector<64x32xf32>
    %83 = tpu.matmul %1, %72, %cst_65 {dimension_numbers = #tpu.dot_dimension_numbers<[1], [0], [0], [1], [0, 0, 1, 1], [], []>} : vector<64x64xbf16>, vector<64x32xbf16>, vector<64x32xf32> -> vector<64x32xf32>
    %84 = arith.truncf %83 : vector<64x32xf32> to vector<64x32xbf16>
    %cst_66 = arith.constant dense<0.000000e+00> : vector<64x32xf32>
    %85 = tpu.matmul %84, %78, %cst_66 {dimension_numbers = #tpu.dot_dimension_numbers<[1], [0], [0], [1], [0, 0, 1, 1], [], []>} : vector<64x32xbf16>, vector<32x32xbf16>, vector<64x32xf32> -> vector<64x32xf32>
    %86 = vector.broadcast %81 : vector<1x32xf32> to vector<64x32xf32>
    %87 = arith.addf %85, %86 : vector<64x32xf32>
    %cst_67 = arith.constant 0.000000e+00 : f32
    %88 = vector.broadcast %cst_67 : f32 to vector<64x32xf32>
    %89 = arith.maximumf %87, %88 : vector<64x32xf32>
    %90 = arith.truncf %89 : vector<64x32xf32> to vector<64x32xbf16>
    %cst_68 = arith.constant dense<0.000000e+00> : vector<64x32xf32>
    %91 = tpu.matmul %90, %80, %cst_68 {dimension_numbers = #tpu.dot_dimension_numbers<[1], [0], [0], [1], [0, 0, 1, 1], [], []>} : vector<64x32xbf16>, vector<32x32xbf16>, vector<64x32xf32> -> vector<64x32xf32>
    %92 = vector.broadcast %82 : vector<1x32xf32> to vector<64x32xf32>
    %93 = arith.addf %91, %92 : vector<64x32xf32>
    %cst_69 = arith.constant 0.000000e+00 : f32
    %94 = vector.broadcast %cst_69 : f32 to vector<64x32xf32>
    %95 = arith.maximumf %93, %94 : vector<64x32xf32>
    %96 = arith.truncf %95 : vector<64x32xf32> to vector<64x32xbf16>
    %c3_70 = arith.constant 3 : index
    %c0_71 = arith.constant 0 : index
    %c0_72 = arith.constant 0 : index
    %97 = vector.load %arg6[%c3_70, %c0_71, %c0_72] : memref<5x32x8xbf16, #tpu.memory_space<vmem>>, vector<1x32x8xbf16>
    %98 = vector.shape_cast %97 : vector<1x32x8xbf16> to vector<32x8xbf16>
    %cst_73 = arith.constant dense<0.000000e+00> : vector<64x8xf32>
    %99 = tpu.matmul %96, %98, %cst_73 {dimension_numbers = #tpu.dot_dimension_numbers<[1], [0], [0], [1], [0, 0, 1, 1], [], []>} : vector<64x32xbf16>, vector<32x8xbf16>, vector<64x8xf32> -> vector<64x8xf32>
    %100 = arith.addf %76, %99 : vector<64x8xf32>
    %c8 = arith.constant 8 : index
    %c0_74 = arith.constant 0 : index
    %c0_75 = arith.constant 0 : index
    %101 = vector.load %arg4[%c8, %c0_74, %c0_75] : memref<10x32x32xbf16, #tpu.memory_space<vmem>>, vector<1x32x32xbf16>
    %102 = vector.shape_cast %101 : vector<1x32x32xbf16> to vector<32x32xbf16>
    %c9 = arith.constant 9 : index
    %c0_76 = arith.constant 0 : index
    %c0_77 = arith.constant 0 : index
    %103 = vector.load %arg4[%c9, %c0_76, %c0_77] : memref<10x32x32xbf16, #tpu.memory_space<vmem>>, vector<1x32x32xbf16>
    %104 = vector.shape_cast %103 : vector<1x32x32xbf16> to vector<32x32xbf16>
    %c8_78 = arith.constant 8 : index
    %c0_79 = arith.constant 0 : index
    %105 = vector.load %arg5[%c8_78, %c0_79] : memref<10x32xf32, #tpu.memory_space<vmem>>, vector<1x32xf32>
    %c9_80 = arith.constant 9 : index
    %c0_81 = arith.constant 0 : index
    %106 = vector.load %arg5[%c9_80, %c0_81] : memref<10x32xf32, #tpu.memory_space<vmem>>, vector<1x32xf32>
    %cst_82 = arith.constant dense<0.000000e+00> : vector<64x32xf32>
    %107 = tpu.matmul %1, %96, %cst_82 {dimension_numbers = #tpu.dot_dimension_numbers<[1], [0], [0], [1], [0, 0, 1, 1], [], []>} : vector<64x64xbf16>, vector<64x32xbf16>, vector<64x32xf32> -> vector<64x32xf32>
    %108 = arith.truncf %107 : vector<64x32xf32> to vector<64x32xbf16>
    %cst_83 = arith.constant dense<0.000000e+00> : vector<64x32xf32>
    %109 = tpu.matmul %108, %102, %cst_83 {dimension_numbers = #tpu.dot_dimension_numbers<[1], [0], [0], [1], [0, 0, 1, 1], [], []>} : vector<64x32xbf16>, vector<32x32xbf16>, vector<64x32xf32> -> vector<64x32xf32>
    %110 = vector.broadcast %105 : vector<1x32xf32> to vector<64x32xf32>
    %111 = arith.addf %109, %110 : vector<64x32xf32>
    %cst_84 = arith.constant 0.000000e+00 : f32
    %112 = vector.broadcast %cst_84 : f32 to vector<64x32xf32>
    %113 = arith.maximumf %111, %112 : vector<64x32xf32>
    %114 = arith.truncf %113 : vector<64x32xf32> to vector<64x32xbf16>
    %cst_85 = arith.constant dense<0.000000e+00> : vector<64x32xf32>
    %115 = tpu.matmul %114, %104, %cst_85 {dimension_numbers = #tpu.dot_dimension_numbers<[1], [0], [0], [1], [0, 0, 1, 1], [], []>} : vector<64x32xbf16>, vector<32x32xbf16>, vector<64x32xf32> -> vector<64x32xf32>
    %116 = vector.broadcast %106 : vector<1x32xf32> to vector<64x32xf32>
    %117 = arith.addf %115, %116 : vector<64x32xf32>
    %cst_86 = arith.constant 0.000000e+00 : f32
    %118 = vector.broadcast %cst_86 : f32 to vector<64x32xf32>
    %119 = arith.maximumf %117, %118 : vector<64x32xf32>
    %120 = arith.truncf %119 : vector<64x32xf32> to vector<64x32xbf16>
    %c4_87 = arith.constant 4 : index
    %c0_88 = arith.constant 0 : index
    %c0_89 = arith.constant 0 : index
    %121 = vector.load %arg6[%c4_87, %c0_88, %c0_89] : memref<5x32x8xbf16, #tpu.memory_space<vmem>>, vector<1x32x8xbf16>
    %122 = vector.shape_cast %121 : vector<1x32x8xbf16> to vector<32x8xbf16>
    %cst_90 = arith.constant dense<0.000000e+00> : vector<64x8xf32>
    %123 = tpu.matmul %120, %122, %cst_90 {dimension_numbers = #tpu.dot_dimension_numbers<[1], [0], [0], [1], [0, 0, 1, 1], [], []>} : vector<64x32xbf16>, vector<32x8xbf16>, vector<64x8xf32> -> vector<64x8xf32>
    %124 = arith.addf %100, %123 : vector<64x8xf32>
    %c0_91 = arith.constant 0 : index
    %c0_92 = arith.constant 0 : index
    %c0_93 = arith.constant 0 : index
    %125 = vector.load %arg2[%c0_91, %c0_92, %c0_93] : memref<1x8x64xbf16, #tpu.memory_space<vmem>>, vector<1x8x64xbf16>
    %126 = vector.shape_cast %125 : vector<1x8x64xbf16> to vector<8x64xbf16>
    %127 = arith.truncf %124 : vector<64x8xf32> to vector<64x8xbf16>
    %cst_94 = arith.constant dense<0.000000e+00> : vector<8x8xf32>
    %128 = tpu.matmul %126, %127, %cst_94 {dimension_numbers = #tpu.dot_dimension_numbers<[1], [0], [0], [1], [0, 0, 1, 1], [], []>} : vector<8x64xbf16>, vector<64x8xbf16>, vector<8x8xf32> -> vector<8x8xf32>
    %129 = arith.negf %128 : vector<8x8xf32>
    %130 = math.exp %129 : vector<8x8xf32>
    %cst_95 = arith.constant 1.000000e+00 : f32
    %131 = vector.broadcast %cst_95 : f32 to vector<8x8xf32>
    %132 = arith.addf %131, %130 : vector<8x8xf32>
    %133 = arith.divf %131, %132 : vector<8x8xf32>
    %c0_96 = arith.constant 0 : index
    %c0_97 = arith.constant 0 : index
    %c0_98 = arith.constant 0 : index
    %134 = vector.load %arg7[%c0_96, %c0_97, %c0_98] : memref<1x8x8xf32, #tpu.memory_space<vmem>>, vector<1x8x8xf32>
    %135 = vector.shape_cast %134 : vector<1x8x8xf32> to vector<8x8xf32>
    %136 = vector.shape_cast %133 : vector<8x8xf32> to vector<1x8x8xf32>
    tpu.vector_store %arg7[%c0_96, %c0_97, %c0_98], %136 {strides = array<i32>} : memref<1x8x8xf32, #tpu.memory_space<vmem>>, vector<1x8x8xf32>,
    return
  }
  func.func @transform_0(%arg0: i32) -> (i32, i32, i32) {
    %c0_i32 = arith.constant 0 : i32
    %c0_i32_0 = arith.constant 0 : i32
    %c0_i32_1 = arith.constant 0 : i32
    return %arg0, %c0_i32, %c0_i32_0 : i32, i32, i32
  }
  func.func @transform_1(%arg0: i32) -> (i32, i32, i32) {
    %c0_i32 = arith.constant 0 : i32
    %c0_i32_0 = arith.constant 0 : i32
    %c0_i32_1 = arith.constant 0 : i32
    return %arg0, %c0_i32, %c0_i32_0 : i32, i32, i32
  }
  func.func @transform_2(%arg0: i32) -> (i32, i32, i32) {
    %c0_i32 = arith.constant 0 : i32
    %c0_i32_0 = arith.constant 0 : i32
    %c0_i32_1 = arith.constant 0 : i32
    return %arg0, %c0_i32, %c0_i32_0 : i32, i32, i32
  }
  func.func @transform_3(%arg0: i32) -> (i32, i32, i32) {
    %c0_i32 = arith.constant 0 : i32
    %c0_i32_0 = arith.constant 0 : i32
    %c0_i32_1 = arith.constant 0 : i32
    %c0_i32_2 = arith.constant 0 : i32
    return %c0_i32, %c0_i32_0, %c0_i32_1 : i32, i32, i32
  }
  func.func @transform_4(%arg0: i32) -> (i32, i32) {
    %c0_i32 = arith.constant 0 : i32
    %c0_i32_0 = arith.constant 0 : i32
    %c0_i32_1 = arith.constant 0 : i32
    return %c0_i32, %c0_i32_0 : i32, i32
  }
  func.func @transform_5(%arg0: i32) -> (i32, i32, i32) {
    %c0_i32 = arith.constant 0 : i32
    %c0_i32_0 = arith.constant 0 : i32
    %c0_i32_1 = arith.constant 0 : i32
    %c0_i32_2 = arith.constant 0 : i32
    return %c0_i32, %c0_i32_0, %c0_i32_1 : i32, i32, i32
  }
  func.func @transform_6(%arg0: i32) -> (i32, i32, i32) {
    %c0_i32 = arith.constant 0 : i32
    %c0_i32_0 = arith.constant 0 : i32
    %c0_i32_1 = arith.constant 0 : i32
    return %arg0, %c0_i32, %c0_i32_0 : i32, i32, i32
  }
}

</mosaic_0001>

<llo_original>
// kernel: tpu_custom_call.1
$region0: #{tpu_custom_call.1}
  #allocation0 [shape = 'u32[]', space=smem, size = 0x4, offset = 0x4, fixed_abs, tag = 'smem constant byte address 0x4 - core index']
  #allocation1 [shape = 'u32[144,128]{1,0:T(1,128)}', space=vmem, size = 0x12000, scoped, tag = 'internal scratch']
  %s0 = inlined_call_operand.vmem [shape: bf16[4,64,64], index: 0, kind: input, shape index: {}]
  %s1 = inlined_call_operand.hbm [shape: bf16[4,8,64], index: 1, kind: input, shape index: {}]
  %s2 = inlined_call_operand.vmem [shape: bf16[4,64,32], index: 2, kind: input, shape index: {}]
  %s3 = inlined_call_operand.vmem [shape: bf16[10,32,32], index: 3, kind: input, shape index: {}]
  %s4 = inlined_call_operand.hbm [shape: f32[10,32], index: 4, kind: input, shape index: {}]
  %s5 = inlined_call_operand.vmem [shape: bf16[5,32,8], index: 5, kind: input, shape index: {}]
  %s6 = inlined_call_operand.hbm [shape: f32[4,8,8], index: 6, kind: output, shape index: {}]
  %s7 = sld [smem:[#allocation0]]
  $region65: #{tpu_custom_call.1} parent=0
    _
  %s9 = ssub.s32 1, %s7
  %s10 = scalar_select 0, %s9, %s7
  $region1: #{tpu_custom_call.1} parent=0
    #allocation2 [shape = 'u8[4096]{0}', space=vmem, size = 0x1000, scoped, tag = 'input window, operand 1']
    #allocation3 [shape = 's32[2]{0}', space=sflag, size = 0x8, scoped, tag = 'scoped memory for tpu_custom_call.1']
    #allocation4 [shape = 's32[2]{0}', space=sflag, size = 0x8, scoped, tag = 'scoped memory for tpu_custom_call.1']
    #allocation5 [shape = 'u8[8192]{0}', space=vmem, size = 0x2000, scoped, tag = 'input window, operand 4, single buffered']
    #allocation6 [shape = 's32[1]{0}', space=sflag, size = 0x4, scoped, tag = 'scoped memory for tpu_custom_call.1']
    #allocation7 [shape = 'u8[8192]{0}', space=vmem, size = 0x2000, scoped, tag = 'output window, operand 0']
    %11 = vsyncpa [#allocation3], 0
    %s12 = scalar_lea.sflag [#allocation3], 1
    %13 = vsyncpa %s12, 0
    %14 = vsyncpa [#allocation6], 0
    %15 = vsyncpa [#allocation4], 0
    %s16 = scalar_lea.sflag [#allocation4], 1
    %17 = vsyncpa %s16, 0
    loop: start=0, step=1, limit=6
    $region2: #{tpu_custom_call.1} parent=1 // loop_pre_header
      _
    $region3: #{tpu_custom_call.1} parent=1 // loop_header
      %s19 = sphi 0, %s23
      %p20 = scmp.ge.s32.totalorder %s19, 6
      %s29 = sphi 0, %s31
      %s32 = sphi 0, %s29
      %s33 = sphi 0, %s32
      %s49 = sphi 0, %s33
      %s55 = sphi 0, %s57
      %s58 = sphi 0, %s55
      %s59 = sphi 0, %s58
      %s75 = sphi 0, %s59
      %s81 = sphi 0, %s83
      %s84 = sphi 0, %s81
      %s85 = sphi 0, %s84
      %s101 = sphi 0, %s85
      %s105 = sphi 0, %s105
      %s107 = sphi 0, %s105
      %s108 = sphi 0, %s107
      %s122 = sphi 0, %s108
      %s126 = sphi 0, %s126
      %s128 = sphi 0, %s126
      %s129 = sphi 0, %s128
      %s143 = sphi 0, %s129
      %s147 = sphi 0, %s147
      %s149 = sphi 0, %s147
      %s150 = sphi 0, %s149
      %s164 = sphi 0, %s150
      %s170 = sphi 0, %s172
      %s173 = sphi 0, %s170
      %s174 = sphi 0, %s173
      %s190 = sphi 0, %s174
    $region4: #{tpu_custom_call.1} parent=1 // loop_header_branch
      %22 = sbr.rel (%p20) target = $region8
    $region5: #{tpu_custom_call.1} parent=1 // loop_body
      %s24 = ssub.s32 %s19, 1
      %s25 = ssub.s32 %s19, 2
      %s26 = sadd.s32 %s19, 1
      %s27 = ssub.s32 %s19, %s26
      %p28 = scmp.eq.s32.totalorder %s27, 0
      %s30 = sadd.s32 %s29, 1
      %s31 = scalar_select %p28, %s29, %s30
      %p34 = pneg %p28
      %p35 = scmp.eq.s32.totalorder %s19, 3
      %p36 = por %p34, %p35
      %p37 = scmp.ne.s32.totalorder %s29, %s32
      %p38 = scmp.eq.s32.totalorder %s19, 0
      %p39 = por %p37, %p38
      %p40 = scmp.ne.s32.totalorder %s29, %s32
      %p41 = scmp.eq.s32.totalorder %s24, 3
      %p42 = por %p40, %p41
      %p43 = scmp.ne.s32.totalorder %s32, %s33
      %p44 = scmp.eq.s32.totalorder %s24, 0
      %p45 = por %p43, %p44
      %p46 = scmp.ne.s32.totalorder %s32, %s33
      %p47 = scmp.eq.s32.totalorder %s25, 3
      %p48 = por %p46, %p47
      %p50 = scmp.ne.s32.totalorder %s33, %s49
      %p51 = scmp.eq.s32.totalorder %s25, 0
      %p52 = por %p50, %p51
      %s53 = ssub.s32 %s19, %s26
      %p54 = scmp.eq.s32.totalorder %s53, 0
      %s56 = sadd.s32 %s55, 1
      %s57 = scalar_select %p54, %s55, %s56
      %p60 = pneg %p54
      %p61 = scmp.eq.s32.totalorder %s19, 3
      %p62 = por %p60, %p61
      %p63 = scmp.ne.s32.totalorder %s55, %s58
      %p64 = scmp.eq.s32.totalorder %s19, 0
      %p65 = por %p63, %p64
      %p66 = scmp.ne.s32.totalorder %s55, %s58
      %p67 = scmp.eq.s32.totalorder %s24, 3
      %p68 = por %p66, %p67
      %p69 = scmp.ne.s32.totalorder %s58, %s59
      %p70 = scmp.eq.s32.totalorder %s24, 0
      %p71 = por %p69, %p70
      %p72 = scmp.ne.s32.totalorder %s58, %s59
      %p73 = scmp.eq.s32.totalorder %s25, 3
      %p74 = por %p72, %p73
      %p76 = scmp.ne.s32.totalorder %s59, %s75
      %p77 = scmp.eq.s32.totalorder %s25, 0
      %p78 = por %p76, %p77
      %s79 = ssub.s32 %s19, %s26
      %p80 = scmp.eq.s32.totalorder %s79, 0
      %s82 = sadd.s32 %s81, 1
      %s83 = scalar_select %p80, %s81, %s82
      %p86 = pneg %p80
      %p87 = scmp.eq.s32.totalorder %s19, 3
      %p88 = por %p86, %p87
      %p89 = scmp.ne.s32.totalorder %s81, %s84
      %p90 = scmp.eq.s32.totalorder %s19, 0
      %p91 = por %p89, %p90
      %p92 = scmp.ne.s32.totalorder %s81, %s84
      %p93 = scmp.eq.s32.totalorder %s24, 3
      %p94 = por %p92, %p93
      %p95 = scmp.ne.s32.totalorder %s84, %s85
      %p96 = scmp.eq.s32.totalorder %s24, 0
      %p97 = por %p95, %p96
      %p98 = scmp.ne.s32.totalorder %s84, %s85
      %p99 = scmp.eq.s32.totalorder %s25, 3
      %p100 = por %p98, %p99
      %p102 = scmp.ne.s32.totalorder %s85, %s101
      %p103 = scmp.eq.s32.totalorder %s25, 0
      %p104 = por %p102, %p103
      %s106 = sadd.s32 %s105, 1
      %p109 = scmp.eq.s32.totalorder %s19, 3
      %p110 = scmp.ne.s32.totalorder %s105, %s107
      %p111 = scmp.eq.s32.totalorder %s19, 0
      %p112 = por %p110, %p111
      %p113 = scmp.ne.s32.totalorder %s105, %s107
      %p114 = scmp.eq.s32.totalorder %s24, 3
      %p115 = por %p113, %p114
      %p116 = scmp.ne.s32.totalorder %s107, %s108
      %p117 = scmp.eq.s32.totalorder %s24, 0
      %p118 = por %p116, %p117
      %p119 = scmp.ne.s32.totalorder %s107, %s108
      %p120 = scmp.eq.s32.totalorder %s25, 3
      %p121 = por %p119, %p120
      %p123 = scmp.ne.s32.totalorder %s108, %s122
      %p124 = scmp.eq.s32.totalorder %s25, 0
      %p125 = por %p123, %p124
      %s127 = sadd.s32 %s126, 1
      %p130 = scmp.eq.s32.totalorder %s19, 3
      %p131 = scmp.ne.s32.totalorder %s126, %s128
      %p132 = scmp.eq.s32.totalorder %s19, 0
      %p133 = por %p131, %p132
      %p134 = scmp.ne.s32.totalorder %s126, %s128
      %p135 = scmp.eq.s32.totalorder %s24, 3
      %p136 = por %p134, %p135
      %p137 = scmp.ne.s32.totalorder %s128, %s129
      %p138 = scmp.eq.s32.totalorder %s24, 0
      %p139 = por %p137, %p138
      %p140 = scmp.ne.s32.totalorder %s128, %s129
      %p141 = scmp.eq.s32.totalorder %s25, 3
      %p142 = por %p140, %p141
      %p144 = scmp.ne.s32.totalorder %s129, %s143
      %p145 = scmp.eq.s32.totalorder %s25, 0
      %p146 = por %p144, %p145
      %s148 = sadd.s32 %s147, 1
      %p151 = scmp.eq.s32.totalorder %s19, 3
      %p152 = scmp.ne.s32.totalorder %s147, %s149
      %p153 = scmp.eq.s32.totalorder %s19, 0
      %p154 = por %p152, %p153
      %p155 = scmp.ne.s32.totalorder %s147, %s149
      %p156 = scmp.eq.s32.totalorder %s24, 3
      %p157 = por %p155, %p156
      %p158 = scmp.ne.s32.totalorder %s149, %s150
      %p159 = scmp.eq.s32.totalorder %s24, 0
      %p160 = por %p158, %p159
      %p161 = scmp.ne.s32.totalorder %s149, %s150
      %p162 = scmp.eq.s32.totalorder %s25, 3
      %p163 = por %p161, %p162
      %p165 = scmp.ne.s32.totalorder %s150, %s164
      %p166 = scmp.eq.s32.totalorder %s25, 0
      %p167 = por %p165, %p166
      %s168 = ssub.s32 %s19, %s26
      %p169 = scmp.eq.s32.totalorder %s168, 0
      %s171 = sadd.s32 %s170, 1
      %s172 = scalar_select %p169, %s170, %s171
      %p175 = pneg %p169
      %p176 = scmp.eq.s32.totalorder %s19, 3
      %p177 = por %p175, %p176
      %p178 = scmp.ne.s32.totalorder %s170, %s173
      %p179 = scmp.eq.s32.totalorder %s19, 0
      %p180 = por %p178, %p179
      %p181 = scmp.ne.s32.totalorder %s170, %s173
      %p182 = scmp.eq.s32.totalorder %s24, 3
      %p183 = por %p181, %p182
      %p184 = scmp.ne.s32.totalorder %s173, %s174
      %p185 = scmp.eq.s32.totalorder %s24, 0
      %p186 = por %p184, %p185
      %p187 = scmp.ne.s32.totalorder %s173, %s174
      %p188 = scmp.eq.s32.totalorder %s25, 3
      %p189 = por %p187, %p188
      %p191 = scmp.ne.s32.totalorder %s174, %s190
      %p192 = scmp.eq.s32.totalorder %s25, 0
      %p193 = por %p191, %p192
      %p194 = scmp.le.s32.totalorder 1, %s19
      %p195 = scmp.lt.s32.totalorder %s19, 5
      %p196 = pnand %p194, %p195
      %p197 = pneg %p196
      // Predicated region
      $region9: #{tpu_custom_call.1} parent=5 // pred_check
        _
      $region10: #{tpu_custom_call.1} parent=5 // pred_check_branch
        %199 = sbr.rel (%p196) target = $region12
      $region11: #{tpu_custom_call.1} parent=5 // pred_region
        %s200 = ssub.s32 %s19, 1
        // Predicated region
        $region13: #{tpu_custom_call.1} parent=11 // pred_check
          %p201 = pneg %p118
        $region14: #{tpu_custom_call.1} parent=11 // pred_check_branch
          %203 = sbr.rel (%p201) target = $region16
        $region15: #{tpu_custom_call.1} parent=11 // pred_region
          _
        $region16: #{tpu_custom_call.1} parent=11 // pred_fallthru
          _
        // Predicated region
        $region17: #{tpu_custom_call.1} parent=11 // pred_check
          %p204 = pneg %p139
        $region18: #{tpu_custom_call.1} parent=11 // pred_check_branch
          %206 = sbr.rel (%p204) target = $region20
        $region19: #{tpu_custom_call.1} parent=11 // pred_region
          %s208 = ssub.s32 256, 256
          %209 = vsyncadd [#allocation6], %s208
          %s210 = sshll.u32 [#allocation5], 4
          %s211 = int_to_ptr.vmem [resolvable:$true] %s210
          %216 = dma.hbm_to_vmem [thread:$0]  %s4, 256, %s211, [#allocation6], 128, 128, 8
        $region20: #{tpu_custom_call.1} parent=11 // pred_fallthru
          _
        // Predicated region
        $region21: #{tpu_custom_call.1} parent=11 // pred_check
          %p217 = pneg %p160
        $region22: #{tpu_custom_call.1} parent=11 // pred_check_branch
          %219 = sbr.rel (%p217) target = $region24
        $region23: #{tpu_custom_call.1} parent=11 // pred_region
          _
        $region24: #{tpu_custom_call.1} parent=11 // pred_fallthru
          _
      $region12: #{tpu_custom_call.1} parent=5 // pred_fallthru
        _
      %p220 = scmp.lt.s32.totalorder %s19, 4
      // Predicated region
      $region25: #{tpu_custom_call.1} parent=5 // pred_check
        %p221 = pneg %p220
      $region26: #{tpu_custom_call.1} parent=5 // pred_check_branch
        %223 = sbr.rel (%p221) target = $region28
      $region27: #{tpu_custom_call.1} parent=5 // pred_region
        // Predicated region
        $region29: #{tpu_custom_call.1} parent=27 // pred_check
          %p224 = pneg %p39
        $region30: #{tpu_custom_call.1} parent=27 // pred_check_branch
          %226 = sbr.rel (%p224) target = $region32
        $region31: #{tpu_custom_call.1} parent=27 // pred_region
          %p227 = scmp.lt.s32.totalorder %s19, 3
          %s228 = scalar_select %p227, %s19, 3
          %s229 = smul.addr %s228, 8
          %s230 = smul.addr %s229, 4
          %s231 = scalar_lea.vmem %s0, %s230
        $region32: #{tpu_custom_call.1} parent=27 // pred_fallthru
          _
        // Predicated region
        $region33: #{tpu_custom_call.1} parent=27 // pred_check
          %p232 = pneg %p65
        $region34: #{tpu_custom_call.1} parent=27 // pred_check_branch
          %234 = sbr.rel (%p232) target = $region36
        $region35: #{tpu_custom_call.1} parent=27 // pred_region
          %s235 = sand.u32 %s55, 1
          %s236 = scalar_lea.sflag [#allocation3], %s235
          %s237 = sand.u32 %s55, 1
          %s238 = smul.addr %s237, 4
          %s239 = scalar_lea.vmem [#allocation2], %s238
          %s241 = ssub.s32 64, 64
          %242 = vsyncadd %s236, %s241
          %s243 = smul.addr %s19, 64
          %s244 = scalar_lea.hbm %s1, %s243
          %s246 = sshll.u32 %s239, 4
          %s247 = int_to_ptr.vmem [resolvable:$true] %s246
          %249 = dma.hbm_to_vmem [thread:$0]  %s244, 64, %s247, %s236
        $region36: #{tpu_custom_call.1} parent=27 // pred_fallthru
          _
        // Predicated region
        $region37: #{tpu_custom_call.1} parent=27 // pred_check
          %p250 = pneg %p91
        $region38: #{tpu_custom_call.1} parent=27 // pred_check_branch
          %252 = sbr.rel (%p250) target = $region40
        $region39: #{tpu_custom_call.1} parent=27 // pred_region
          %p253 = scmp.lt.s32.totalorder %s19, 3
          %s254 = scalar_select %p253, %s19, 3
          %s255 = smul.addr %s254, 8
          %s256 = smul.addr %s255, 4
          %s257 = scalar_lea.vmem %s2, %s256
        $region40: #{tpu_custom_call.1} parent=27 // pred_fallthru
          _
      $region28: #{tpu_custom_call.1} parent=5 // pred_fallthru
        _
      %p258 = scmp.le.s32.totalorder 1, %s19
      %p259 = scmp.lt.s32.totalorder %s19, 5
      %p260 = pnand %p258, %p259
      %p261 = pneg %p260
      // Predicated region
      $region41: #{tpu_custom_call.1} parent=5 // pred_check
        _
      $region42: #{tpu_custom_call.1} parent=5 // pred_check_branch
        %263 = sbr.rel (%p260) target = $region44
      $region43: #{tpu_custom_call.1} parent=5 // pred_region
        %s264 = ssub.s32 %s19, 1
        %s265 = sand.u32 %s58, 1
        %s266 = scalar_lea.sflag [#allocation3], %s265
        %s267 = sand.u32 %s58, 1
        %s268 = smul.addr %s267, 4
        %s269 = scalar_lea.vmem [#allocation2], %s268
        // Predicated region
        $region45: #{tpu_custom_call.1} parent=43 // pred_check
          %p270 = pneg %p71
        $region46: #{tpu_custom_call.1} parent=43 // pred_check_branch
          %272 = sbr.rel (%p270) target = $region48
        $region47: #{tpu_custom_call.1} parent=43 // pred_region
          %273 = dma.done %s266, 64
        $region48: #{tpu_custom_call.1} parent=43 // pred_fallthru
          _
        // Predicated region
        $region49: #{tpu_custom_call.1} parent=43 // pred_check
          %p274 = pneg %p139
        $region50: #{tpu_custom_call.1} parent=43 // pred_check_branch
          %276 = sbr.rel (%p274) target = $region52
        $region51: #{tpu_custom_call.1} parent=43 // pred_region
          %277 = dma.done [#allocation6], 256
        $region52: #{tpu_custom_call.1} parent=43 // pred_fallthru
          _
        %p278 = scmp.lt.s32.totalorder %s24, 3
        %s279 = scalar_select %p278, %s24, 3
        %s280 = smul.addr %s279, 8
        %s281 = smul.addr %s280, 4
        %s282 = scalar_lea.vmem %s0, %s281
        %p283 = pneg %p45
        %p284 = pneg %p42
        %s285 = sand.u32 %s58, 1
        %s286 = scalar_lea.sflag [#allocation3], %s285
        %s287 = sand.u32 %s58, 1
        %s288 = smul.addr %s287, 4
        %s289 = scalar_lea.vmem [#allocation2], %s288
        %p290 = pneg %p71
        %p291 = pneg %p68
        %p292 = scmp.lt.s32.totalorder %s24, 3
        %s293 = scalar_select %p292, %s24, 3
        %s294 = smul.addr %s293, 8
        %s295 = smul.addr %s294, 4
        %s296 = scalar_lea.vmem %s2, %s295
        %p297 = pneg %p97
        %p298 = pneg %p94
        %p299 = pneg %p118
        %p300 = pneg %p115
        %p301 = pneg %p139
        %p302 = pneg %p136
        %p303 = pneg %p160
        %p304 = pneg %p157
        %p305 = pneg %p186
        %p306 = pneg %p183
        %s307 = sand.u32 %s173, 1
        %s308 = scalar_lea.sflag [#allocation4], %s307
        %s309 = sand.u32 %s173, 1
        %s310 = smul.addr %s309, 8
        %s311 = scalar_lea.vmem [#allocation7], %s310
        %p312 = scmp.lt.s32.totalorder %s24, 3
        %s313 = scalar_select %p312, %s24, 3
        %s314 = smul.addr %s313, 8
        %s315 = smul.addr %s314, 4
        %s316 = scalar_lea.vmem %s0, %s315
        %p317 = scmp.lt.s32.totalorder %s24, 3
        %s318 = scalar_select %p317, %s24, 3
        %s319 = smul.addr %s318, 8
        %s320 = smul.addr %s319, 4
        %s321 = scalar_lea.vmem %s2, %s320
        %v323 = vld [vmem:[%s316] sm:$0xf]
        %v324 = vld [vmem:[%s316 + $0x4] sm:$0xf]
        %v325 = vld [vmem:[%s316 + $0x8] sm:$0xf]
        %v326 = vld [vmem:[%s316 + $0xc] sm:$0xf]
        %v327 = vld [vmem:[%s316 + $0x10] sm:$0xf]
        %v328 = vld [vmem:[%s316 + $0x14] sm:$0xf]
        %v329 = vld [vmem:[%s316 + $0x18] sm:$0xf]
        %v330 = vld [vmem:[%s316 + $0x1c] sm:$0xf]
        %v331 = vld [vmem:[%s321] sm:$0xf]
        %v332 = vld [vmem:[%s321 + $0x4] sm:$0xf]
        %v333 = vld [vmem:[%s321 + $0x8] sm:$0xf]
        %v334 = vld [vmem:[%s321 + $0xc] sm:$0xf]
        %v335 = vld [vmem:[%s321 + $0x10] sm:$0xf]
        %v336 = vld [vmem:[%s321 + $0x14] sm:$0xf]
        %v337 = vld [vmem:[%s321 + $0x18] sm:$0xf]
        %v338 = vld [vmem:[%s321 + $0x1c] sm:$0xf]
        %v339 = vld [vmem:[%s3] sm:$0xf]
        %v340 = vld [vmem:[%s3 + $0x4] sm:$0xf]
        %v341 = vld [vmem:[%s3 + $0x8] sm:$0xf]
        %v342 = vld [vmem:[%s3 + $0xc] sm:$0xf]
        %s343 = scalar_lea.vmem %s3, 16
        %v344 = vld [vmem:[%s343] sm:$0xf]
        %v345 = vld [vmem:[%s343 + $0x4] sm:$0xf]
        %v346 = vld [vmem:[%s343 + $0x8] sm:$0xf]
        %v347 = vld [vmem:[%s343 + $0xc] sm:$0xf]
        %v348 = vld [vmem:[#allocation5] sm:$0x1]
        %v349 = vld [vmem:[#allocation5 + $0x1] sm:$0x1]
        %v358 = vunpack.c.l.b16 %v323
        %v359 = vunpack.c.l.b16 %v324
        %v360 = vunpack.c.l.b16 %v325
        %v361 = vunpack.c.l.b16 %v326
        %v362 = vunpack.c.l.b16 %v327
        %v363 = vunpack.c.l.b16 %v328
        %v364 = vunpack.c.l.b16 %v329
        %v365 = vunpack.c.l.b16 %v330
        %v366 = vpack.c.b16 %v359, %v358
        %v367 = vpack.c.b16 %v361, %v360
        %v368 = vpack.c.b16 %v363, %v362
        %v369 = vpack.c.b16 %v365, %v364
        %v378 = vunpack.c.l.b16 %v331
        %v379 = vunpack.c.l.b16 %v332
        %v380 = vunpack.c.l.b16 %v333
        %v381 = vunpack.c.l.b16 %v334
        %v382 = vunpack.c.l.b16 %v335
        %v383 = vunpack.c.l.b16 %v336
        %v384 = vunpack.c.l.b16 %v337
        %v385 = vunpack.c.l.b16 %v338
        %v386 = vpack.c.b16 %v379, %v378
        %v387 = vpack.c.b16 %v381, %v380
        %v388 = vpack.c.b16 %v383, %v382
        %v389 = vpack.c.b16 %v385, %v384
        %vm394 = vcmask 523264
        %v396 = vsel %vm394, %v366, 0
        %v399 = vsel %vm394, %v367, 0
        %v402 = vsel %vm394, %v368, 0
        %v405 = vsel %vm394, %v369, 0
        %407 = vmatprep.subr.bf16.mxu0 0
        %408 = vmatpush1.bf16.msra.mxu0 0
        %409 = vmatprep.subr.bf16.mxu0 0
        %410 = vmatpush1.bf16.msra.mxu0 0
        %411 = vmatprep.subr.bf16.mxu0 0
        %412 = vmatpush1.bf16.msra.mxu0 0
        %413 = vmatprep.subr.bf16.mxu0 0
        %414 = vmatpush1.bf16.msra.mxu0 0
        %415 = vmatprep.subr.bf16.mxu0 0
        %416 = vmatpush1.bf16.msra.mxu0 %v389
        %417 = vmatprep.subr.bf16.mxu0 0
        %418 = vmatpush1.bf16.msra.mxu0 %v388
        %419 = vmatprep.subr.bf16.mxu0 0
        %420 = vmatpush1.bf16.msra.mxu0 %v387
        %421 = vmatprep.subr.bf16.mxu0 0
        %422 = vmatpush1.bf16.msra.mxu0 %v386
        %423 = vmatprep.subr.bf16.mxu0 0
        %424 = vmatpush2.bf16.msra.mxu0 0
        %425 = vmatprep.subr.bf16.mxu0 0
        %426 = vmatpush2.bf16.msra.mxu0 0
        %427 = vmatprep.subr.bf16.mxu0 0
        %428 = vmatpush2.bf16.msra.mxu0 0
        %429 = vmatprep.subr.bf16.mxu0 0
        %430 = vmatpush2.bf16.msra.mxu0 0
        %431 = vmatprep.subr.bf16.mxu0 0
        %432 = vmatpush2.bf16.msra.mxu0 0
        %433 = vmatprep.subr.bf16.mxu0 0
        %434 = vmatpush2.bf16.msra.mxu0 0
        %435 = vmatprep.subr.bf16.mxu0 0
        %436 = vmatpush2.bf16.msra.mxu0 0
        %437 = vmatprep.subr.bf16.mxu0 0
        %438 = vmatpush2.bf16.msra.mxu0 0
        %439 = vmatprep.mubr.bf16.mxu0 0
        %440 = vmatmul.mubr.bf16.gmra.mxu0 %v396
        %v441 = vpop.f32.mrf.mxu0
        %v442 = vadd.f32 0.0, %v441
        %v443 = vpop.f32.mrf.mxu0
        %v444 = vpop.f32.mrf.mxu0
        %v445 = vadd.f32 0.0, %v444
        %v446 = vpop.f32.mrf.mxu0
        %447 = vmatprep.mubr.bf16.mxu0 0
        %448 = vmatmul.mubr.bf16.gmra.mxu0 %v399
        %v449 = vpop.f32.mrf.mxu0
        %v450 = vadd.f32 0.0, %v449
        %v451 = vpop.f32.mrf.mxu0
        %v452 = vpop.f32.mrf.mxu0
        %v453 = vadd.f32 0.0, %v452
        %v454 = vpop.f32.mrf.mxu0
        %455 = vmatprep.mubr.bf16.mxu0 0
        %456 = vmatmul.mubr.bf16.gmra.mxu0 %v402
        %v457 = vpop.f32.mrf.mxu0
        %v458 = vadd.f32 0.0, %v457
        %v459 = vpop.f32.mrf.mxu0
        %v460 = vpop.f32.mrf.mxu0
        %v461 = vadd.f32 0.0, %v460
        %v462 = vpop.f32.mrf.mxu0
        %463 = vmatprep.mubr.bf16.mxu0 0
        %464 = vmatmul.mubr.bf16.gmra.mxu0 %v405
        %v465 = vpop.f32.mrf.mxu0
        %v466 = vadd.f32 0.0, %v465
        %v467 = vpop.f32.mrf.mxu0
        %v468 = vpop.f32.mrf.mxu0
        %v469 = vadd.f32 0.0, %v468
        %v470 = vpop.f32.mrf.mxu0
        %471 = vdwg.mxu0
        %v472 = vpack.c.bf16 %v445, %v442
        %v473 = vpack.c.bf16 %v453, %v450
        %v474 = vpack.c.bf16 %v461, %v458
        %v475 = vpack.c.bf16 %v469, %v466
        %v476 = vlaneseq
        %v477 = vshrl.u32 %v476, 7
        %v478 = vsub.s32 0, %v477
        %v479 = vrot.slane %v348, %v478
        %v484 = vunpack.c.l.b16 %v339
        %v485 = vunpack.c.l.b16 %v340
        %v486 = vunpack.c.l.b16 %v341
        %v487 = vunpack.c.l.b16 %v342
        %v488 = vpack.c.b16 %v485, %v484
        %v489 = vpack.c.b16 %v487, %v486
        %vm492 = vcmask 261120
        %v494 = vsel %vm492, %v472, 0
        %v497 = vsel %vm492, %v473, 0
        %v500 = vsel %vm492, %v474, 0
        %v503 = vsel %vm492, %v475, 0
        %505 = vmatprep.subr.bf16.mxu0 0
        %506 = vmatpush1.bf16.msra.mxu0 0
        %507 = vmatprep.subr.bf16.mxu0 0
        %508 = vmatpush1.bf16.msra.mxu0 0
        %509 = vmatprep.subr.bf16.mxu0 0
        %510 = vmatpush1.bf16.msra.mxu0 0
        %511 = vmatprep.subr.bf16.mxu0 0
        %512 = vmatpush1.bf16.msra.mxu0 0
        %513 = vmatprep.subr.bf16.mxu0 0
        %514 = vmatpush1.bf16.msra.mxu0 0
        %515 = vmatprep.subr.bf16.mxu0 0
        %516 = vmatpush1.bf16.msra.mxu0 0
        %517 = vmatprep.subr.bf16.mxu0 0
        %518 = vmatpush1.bf16.msra.mxu0 %v489
        %519 = vmatprep.subr.bf16.mxu0 0
        %520 = vmatpush1.bf16.msra.mxu0 %v488
        %521 = vmatprep.subr.bf16.mxu0 0
        %522 = vmatpush2.bf16.msra.mxu0 0
        %523 = vmatprep.subr.bf16.mxu0 0
        %524 = vmatpush2.bf16.msra.mxu0 0
        %525 = vmatprep.subr.bf16.mxu0 0
        %526 = vmatpush2.bf16.msra.mxu0 0
        %527 = vmatprep.subr.bf16.mxu0 0
        %528 = vmatpush2.bf16.msra.mxu0 0
        %529 = vmatprep.subr.bf16.mxu0 0
        %530 = vmatpush2.bf16.msra.mxu0 0
        %531 = vmatprep.subr.bf16.mxu0 0
        %532 = vmatpush2.bf16.msra.mxu0 0
        %533 = vmatprep.subr.bf16.mxu0 0
        %534 = vmatpush2.bf16.msra.mxu0 0
        %535 = vmatprep.subr.bf16.mxu0 0
        %536 = vmatpush2.bf16.msra.mxu0 0
        %537 = vmatprep.mubr.bf16.mxu0 0
        %538 = vmatmul.mubr.bf16.gmra.mxu0 %v494
        %v539 = vpop.f32.mrf.mxu0
        %v540 = vadd.f32 %v479, %v539
        %v541 = vpop.f32.mrf.mxu0
        %v542 = vpop.f32.mrf.mxu0
        %v543 = vadd.f32 %v479, %v542
        %v544 = vpop.f32.mrf.mxu0
        %545 = vmatprep.mubr.bf16.mxu0 0
        %546 = vmatmul.mubr.bf16.gmra.mxu0 %v497
        %v547 = vpop.f32.mrf.mxu0
        %v548 = vadd.f32 %v479, %v547
        %v549 = vpop.f32.mrf.mxu0
        %v550 = vpop.f32.mrf.mxu0
        %v551 = vadd.f32 %v479, %v550
        %v552 = vpop.f32.mrf.mxu0
        %553 = vmatprep.mubr.bf16.mxu0 0
        %554 = vmatmul.mubr.bf16.gmra.mxu0 %v500
        %v555 = vpop.f32.mrf.mxu0
        %v556 = vadd.f32 %v479, %v555
        %v557 = vpop.f32.mrf.mxu0
        %v558 = vpop.f32.mrf.mxu0
        %v559 = vadd.f32 %v479, %v558
        %v560 = vpop.f32.mrf.mxu0
        %561 = vmatprep.mubr.bf16.mxu0 0
        %562 = vmatmul.mubr.bf16.gmra.mxu0 %v503
        %v563 = vpop.f32.mrf.mxu0
        %v564 = vadd.f32 %v479, %v563
        %v565 = vpop.f32.mrf.mxu0
        %v566 = vpop.f32.mrf.mxu0
        %v567 = vadd.f32 %v479, %v566
        %v568 = vpop.f32.mrf.mxu0
        %569 = vdwg.mxu0
        %v570 = vmax.f32 %v540, 0.0
        %v571 = vmax.f32 %v543, 0.0
        %v572 = vmax.f32 %v548, 0.0
        %v573 = vmax.f32 %v551, 0.0
        %v574 = vmax.f32 %v556, 0.0
        %v575 = vmax.f32 %v559, 0.0
        %v576 = vmax.f32 %v564, 0.0
        %v577 = vmax.f32 %v567, 0.0
        %v578 = vpack.c.bf16 %v571, %v570
        %v579 = vpack.c.bf16 %v573, %v572
        %v580 = vpack.c.bf16 %v575, %v574
        %v581 = vpack.c.bf16 %v577, %v576
        %v582 = vlaneseq
        %v583 = vshrl.u32 %v582, 7
        %v584 = vsub.s32 0, %v583
        %v585 = vrot.slane %v349, %v584
        %v590 = vunpack.c.l.b16 %v344
        %v591 = vunpack.c.l.b16 %v345
        %v592 = vunpack.c.l.b16 %v346
        %v593 = vunpack.c.l.b16 %v347
        %v594 = vpack.c.b16 %v591, %v590
        %v595 = vpack.c.b16 %v593, %v592
        %v599 = vsel %vm492, %v578, 0
        %v602 = vsel %vm492, %v579, 0
        %v605 = vsel %vm492, %v580, 0
        %v608 = vsel %vm492, %v581, 0
        %610 = vmatprep.subr.bf16.mxu0 0
        %611 = vmatpush1.bf16.msra.mxu0 0
        %612 = vmatprep.subr.bf16.mxu0 0
        %613 = vmatpush1.bf16.msra.mxu0 0
        %614 = vmatprep.subr.bf16.mxu0 0
        %615 = vmatpush1.bf16.msra.mxu0 0
        %616 = vmatprep.subr.bf16.mxu0 0
        %617 = vmatpush1.bf16.msra.mxu0 0
        %618 = vmatprep.subr.bf16.mxu0 0
        %619 = vmatpush1.bf16.msra.mxu0 0
        %620 = vmatprep.subr.bf16.mxu0 0
        %621 = vmatpush1.bf16.msra.mxu0 0
        %622 = vmatprep.subr.bf16.mxu0 0
        %623 = vmatpush1.bf16.msra.mxu0 %v595
        %624 = vmatprep.subr.bf16.mxu0 0
        %625 = vmatpush1.bf16.msra.mxu0 %v594
        %626 = vmatprep.subr.bf16.mxu0 0
        %627 = vmatpush2.bf16.msra.mxu0 0
        %628 = vmatprep.subr.bf16.mxu0 0
        %629 = vmatpush2.bf16.msra.mxu0 0
        %630 = vmatprep.subr.bf16.mxu0 0
        %631 = vmatpush2.bf16.msra.mxu0 0
        %632 = vmatprep.subr.bf16.mxu0 0
        %633 = vmatpush2.bf16.msra.mxu0 0
        %634 = vmatprep.subr.bf16.mxu0 0
        %635 = vmatpush2.bf16.msra.mxu0 0
        %636 = vmatprep.subr.bf16.mxu0 0
        %637 = vmatpush2.bf16.msra.mxu0 0
        %638 = vmatprep.subr.bf16.mxu0 0
        %639 = vmatpush2.bf16.msra.mxu0 0
        %640 = vmatprep.subr.bf16.mxu0 0
        %641 = vmatpush2.bf16.msra.mxu0 0
        %642 = vmatprep.mubr.bf16.mxu0 0
        %643 = vmatmul.mubr.bf16.gmra.mxu0 %v599
        %v644 = vpop.f32.mrf.mxu0
        %v645 = vadd.f32 %v585, %v644
        %v646 = vpop.f32.mrf.mxu0
        %v647 = vpop.f32.mrf.mxu0
        %v648 = vadd.f32 %v585, %v647
        %v649 = vpop.f32.mrf.mxu0
        %650 = vmatprep.mubr.bf16.mxu0 0
        %651 = vmatmul.mubr.bf16.gmra.mxu0 %v602
        %v652 = vpop.f32.mrf.mxu0
        %v653 = vadd.f32 %v585, %v652
        %v654 = vpop.f32.mrf.mxu0
        %v655 = vpop.f32.mrf.mxu0
        %v656 = vadd.f32 %v585, %v655
        %v657 = vpop.f32.mrf.mxu0
        %658 = vmatprep.mubr.bf16.mxu0 0
        %659 = vmatmul.mubr.bf16.gmra.mxu0 %v605
        %v660 = vpop.f32.mrf.mxu0
        %v661 = vadd.f32 %v585, %v660
        %v662 = vpop.f32.mrf.mxu0
        %v663 = vpop.f32.mrf.mxu0
        %v664 = vadd.f32 %v585, %v663
        %v665 = vpop.f32.mrf.mxu0
        %666 = vmatprep.mubr.bf16.mxu0 0
        %667 = vmatmul.mubr.bf16.gmra.mxu0 %v608
        %v668 = vpop.f32.mrf.mxu0
        %v669 = vadd.f32 %v585, %v668
        %v670 = vpop.f32.mrf.mxu0
        %v671 = vpop.f32.mrf.mxu0
        %v672 = vadd.f32 %v585, %v671
        %v673 = vpop.f32.mrf.mxu0
        %674 = vdwg.mxu0
        %v675 = vmax.f32 %v645, 0.0
        %v676 = vmax.f32 %v648, 0.0
        %v677 = vmax.f32 %v653, 0.0
        %v678 = vmax.f32 %v656, 0.0
        %v679 = vmax.f32 %v661, 0.0
        %v680 = vmax.f32 %v664, 0.0
        %v681 = vmax.f32 %v669, 0.0
        %v682 = vmax.f32 %v672, 0.0
        %v683 = vpack.c.bf16 %v676, %v675
        %v684 = vpack.c.bf16 %v678, %v677
        %v685 = vpack.c.bf16 %v680, %v679
        %v686 = vpack.c.bf16 %v682, %v681
        %v687 = vld [vmem:[%s5] sm:$0xf]
        %v688 = vld [vmem:[%s5 + $0x4] sm:$0xf]
        %v689 = vld [vmem:[%s5 + $0x8] sm:$0xf]
        %v690 = vld [vmem:[%s5 + $0xc] sm:$0xf]
        %s691 = scalar_lea.vmem %s3, 32
        %v692 = vld [vmem:[%s691] sm:$0xf]
        %v693 = vld [vmem:[%s691 + $0x4] sm:$0xf]
        %v694 = vld [vmem:[%s691 + $0x8] sm:$0xf]
        %v695 = vld [vmem:[%s691 + $0xc] sm:$0xf]
        %s696 = scalar_lea.vmem %s3, 48
        %v697 = vld [vmem:[%s696] sm:$0xf]
        %v698 = vld [vmem:[%s696 + $0x4] sm:$0xf]
        %v699 = vld [vmem:[%s696 + $0x8] sm:$0xf]
        %v700 = vld [vmem:[%s696 + $0xc] sm:$0xf]
        %v701 = vld [vmem:[#allocation5 + $0x2] sm:$0x1]
        %v702 = vld [vmem:[#allocation5 + $0x3] sm:$0x1]
        %703 = vmatprep.subr.bf16.mxu0 0
        %704 = vmatpush1.bf16.msra.mxu0 0
        %705 = vmatprep.subr.bf16.mxu0 0
        %706 = vmatpush1.bf16.msra.mxu0 0
        %707 = vmatprep.subr.bf16.mxu0 0
        %708 = vmatpush1.bf16.msra.mxu0 0
        %709 = vmatprep.subr.bf16.mxu0 0
        %710 = vmatpush1.bf16.msra.mxu0 0
        %711 = vmatprep.subr.bf16.mxu0 0
        %712 = vmatpush1.bf16.msra.mxu0 %v686
        %713 = vmatprep.subr.bf16.mxu0 0
        %714 = vmatpush1.bf16.msra.mxu0 %v685
        %715 = vmatprep.subr.bf16.mxu0 0
        %716 = vmatpush1.bf16.msra.mxu0 %v684
        %717 = vmatprep.subr.bf16.mxu0 0
        %718 = vmatpush1.bf16.msra.mxu0 %v683
        %719 = vmatprep.subr.bf16.mxu0 0
        %720 = vmatpush2.bf16.msra.mxu0 0
        %721 = vmatprep.subr.bf16.mxu0 0
        %722 = vmatpush2.bf16.msra.mxu0 0
        %723 = vmatprep.subr.bf16.mxu0 0
        %724 = vmatpush2.bf16.msra.mxu0 0
        %725 = vmatprep.subr.bf16.mxu0 0
        %726 = vmatpush2.bf16.msra.mxu0 0
        %727 = vmatprep.subr.bf16.mxu0 0
        %728 = vmatpush2.bf16.msra.mxu0 0
        %729 = vmatprep.subr.bf16.mxu0 0
        %730 = vmatpush2.bf16.msra.mxu0 0
        %731 = vmatprep.subr.bf16.mxu0 0
        %732 = vmatpush2.bf16.msra.mxu0 0
        %733 = vmatprep.subr.bf16.mxu0 0
        %734 = vmatpush2.bf16.msra.mxu0 0
        %735 = vmatprep.mubr.bf16.mxu0 0
        %736 = vmatmul.mubr.bf16.gmra.mxu0 %v396
        %v737 = vpop.f32.mrf.mxu0
        %v738 = vadd.f32 0.0, %v737
        %v739 = vpop.f32.mrf.mxu0
        %v740 = vpop.f32.mrf.mxu0
        %v741 = vadd.f32 0.0, %v740
        %v742 = vpop.f32.mrf.mxu0
        %743 = vmatprep.mubr.bf16.mxu0 0
        %744 = vmatmul.mubr.bf16.gmra.mxu0 %v399
        %v745 = vpop.f32.mrf.mxu0
        %v746 = vadd.f32 0.0, %v745
        %v747 = vpop.f32.mrf.mxu0
        %v748 = vpop.f32.mrf.mxu0
        %v749 = vadd.f32 0.0, %v748
        %v750 = vpop.f32.mrf.mxu0
        %751 = vmatprep.mubr.bf16.mxu0 0
        %752 = vmatmul.mubr.bf16.gmra.mxu0 %v402
        %v753 = vpop.f32.mrf.mxu0
        %v754 = vadd.f32 0.0, %v753
        %v755 = vpop.f32.mrf.mxu0
        %v756 = vpop.f32.mrf.mxu0
        %v757 = vadd.f32 0.0, %v756
        %v758 = vpop.f32.mrf.mxu0
        %759 = vmatprep.mubr.bf16.mxu0 0
        %760 = vmatmul.mubr.bf16.gmra.mxu0 %v405
        %v761 = vpop.f32.mrf.mxu0
        %v762 = vadd.f32 0.0, %v761
        %v763 = vpop.f32.mrf.mxu0
        %v764 = vpop.f32.mrf.mxu0
        %v765 = vadd.f32 0.0, %v764
        %v766 = vpop.f32.mrf.mxu0
        %767 = vdwg.mxu0
        %v768 = vpack.c.bf16 %v741, %v738
        %v769 = vpack.c.bf16 %v749, %v746
        %v770 = vpack.c.bf16 %v757, %v754
        %v771 = vpack.c.bf16 %v765, %v762
        %v772 = vlaneseq
        %v773 = vshrl.u32 %v772, 7
        %v774 = vsub.s32 0, %v773
        %v775 = vrot.slane %v701, %v774
        %v780 = vunpack.c.l.b16 %v692
        %v781 = vunpack.c.l.b16 %v693
        %v782 = vunpack.c.l.b16 %v694
        %v783 = vunpack.c.l.b16 %v695
        %v784 = vpack.c.b16 %v781, %v780
        %v785 = vpack.c.b16 %v783, %v782
        %v789 = vsel %vm492, %v768, 0
        %v792 = vsel %vm492, %v769, 0
        %v795 = vsel %vm492, %v770, 0
        %v798 = vsel %vm492, %v771, 0
        %800 = vmatprep.subr.bf16.mxu0 0
        %801 = vmatpush1.bf16.msra.mxu0 0
        %802 = vmatprep.subr.bf16.mxu0 0
        %803 = vmatpush1.bf16.msra.mxu0 0
        %804 = vmatprep.subr.bf16.mxu0 0
        %805 = vmatpush1.bf16.msra.mxu0 0
        %806 = vmatprep.subr.bf16.mxu0 0
        %807 = vmatpush1.bf16.msra.mxu0 0
        %808 = vmatprep.subr.bf16.mxu0 0
        %809 = vmatpush1.bf16.msra.mxu0 0
        %810 = vmatprep.subr.bf16.mxu0 0
        %811 = vmatpush1.bf16.msra.mxu0 0
        %812 = vmatprep.subr.bf16.mxu0 0
        %813 = vmatpush1.bf16.msra.mxu0 %v785
        %814 = vmatprep.subr.bf16.mxu0 0
        %815 = vmatpush1.bf16.msra.mxu0 %v784
        %816 = vmatprep.subr.bf16.mxu0 0
        %817 = vmatpush2.bf16.msra.mxu0 0
        %818 = vmatprep.subr.bf16.mxu0 0
        %819 = vmatpush2.bf16.msra.mxu0 0
        %820 = vmatprep.subr.bf16.mxu0 0
        %821 = vmatpush2.bf16.msra.mxu0 0
        %822 = vmatprep.subr.bf16.mxu0 0
        %823 = vmatpush2.bf16.msra.mxu0 0
        %824 = vmatprep.subr.bf16.mxu0 0
        %825 = vmatpush2.bf16.msra.mxu0 0
        %826 = vmatprep.subr.bf16.mxu0 0
        %827 = vmatpush2.bf16.msra.mxu0 0
        %828 = vmatprep.subr.bf16.mxu0 0
        %829 = vmatpush2.bf16.msra.mxu0 0
        %830 = vmatprep.subr.bf16.mxu0 0
        %831 = vmatpush2.bf16.msra.mxu0 0
        %832 = vmatprep.mubr.bf16.mxu0 0
        %833 = vmatmul.mubr.bf16.gmra.mxu0 %v789
        %v834 = vpop.f32.mrf.mxu0
        %v835 = vadd.f32 %v775, %v834
        %v836 = vpop.f32.mrf.mxu0
        %v837 = vpop.f32.mrf.mxu0
        %v838 = vadd.f32 %v775, %v837
        %v839 = vpop.f32.mrf.mxu0
        %840 = vmatprep.mubr.bf16.mxu0 0
        %841 = vmatmul.mubr.bf16.gmra.mxu0 %v792
        %v842 = vpop.f32.mrf.mxu0
        %v843 = vadd.f32 %v775, %v842
        %v844 = vpop.f32.mrf.mxu0
        %v845 = vpop.f32.mrf.mxu0
        %v846 = vadd.f32 %v775, %v845
        %v847 = vpop.f32.mrf.mxu0
        %848 = vmatprep.mubr.bf16.mxu0 0
        %849 = vmatmul.mubr.bf16.gmra.mxu0 %v795
        %v850 = vpop.f32.mrf.mxu0
        %v851 = vadd.f32 %v775, %v850
        %v852 = vpop.f32.mrf.mxu0
        %v853 = vpop.f32.mrf.mxu0
        %v854 = vadd.f32 %v775, %v853
        %v855 = vpop.f32.mrf.mxu0
        %856 = vmatprep.mubr.bf16.mxu0 0
        %857 = vmatmul.mubr.bf16.gmra.mxu0 %v798
        %v858 = vpop.f32.mrf.mxu0
        %v859 = vadd.f32 %v775, %v858
        %v860 = vpop.f32.mrf.mxu0
        %v861 = vpop.f32.mrf.mxu0
        %v862 = vadd.f32 %v775, %v861
        %v863 = vpop.f32.mrf.mxu0
        %864 = vdwg.mxu0
        %v865 = vmax.f32 %v835, 0.0
        %v866 = vmax.f32 %v838, 0.0
        %v867 = vmax.f32 %v843, 0.0
        %v868 = vmax.f32 %v846, 0.0
        %v869 = vmax.f32 %v851, 0.0
        %v870 = vmax.f32 %v854, 0.0
        %v871 = vmax.f32 %v859, 0.0
        %v872 = vmax.f32 %v862, 0.0
        %v873 = vpack.c.bf16 %v866, %v865
        %v874 = vpack.c.bf16 %v868, %v867
        %v875 = vpack.c.bf16 %v870, %v869
        %v876 = vpack.c.bf16 %v872, %v871
        %v877 = vlaneseq
        %v878 = vshrl.u32 %v877, 7
        %v879 = vsub.s32 0, %v878
        %v880 = vrot.slane %v702, %v879
        %v885 = vunpack.c.l.b16 %v697
        %v886 = vunpack.c.l.b16 %v698
        %v887 = vunpack.c.l.b16 %v699
        %v888 = vunpack.c.l.b16 %v700
        %v889 = vpack.c.b16 %v886, %v885
        %v890 = vpack.c.b16 %v888, %v887
        %v894 = vsel %vm492, %v873, 0
        %v897 = vsel %vm492, %v874, 0
        %v900 = vsel %vm492, %v875, 0
        %v903 = vsel %vm492, %v876, 0
        %905 = vmatprep.subr.bf16.mxu0 0
        %906 = vmatpush1.bf16.msra.mxu0 0
        %907 = vmatprep.subr.bf16.mxu0 0
        %908 = vmatpush1.bf16.msra.mxu0 0
        %909 = vmatprep.subr.bf16.mxu0 0
        %910 = vmatpush1.bf16.msra.mxu0 0
        %911 = vmatprep.subr.bf16.mxu0 0
        %912 = vmatpush1.bf16.msra.mxu0 0
        %913 = vmatprep.subr.bf16.mxu0 0
        %914 = vmatpush1.bf16.msra.mxu0 0
        %915 = vmatprep.subr.bf16.mxu0 0
        %916 = vmatpush1.bf16.msra.mxu0 0
        %917 = vmatprep.subr.bf16.mxu0 0
        %918 = vmatpush1.bf16.msra.mxu0 %v890
        %919 = vmatprep.subr.bf16.mxu0 0
        %920 = vmatpush1.bf16.msra.mxu0 %v889
        %921 = vmatprep.subr.bf16.mxu0 0
        %922 = vmatpush2.bf16.msra.mxu0 0
        %923 = vmatprep.subr.bf16.mxu0 0
        %924 = vmatpush2.bf16.msra.mxu0 0
        %925 = vmatprep.subr.bf16.mxu0 0
        %926 = vmatpush2.bf16.msra.mxu0 0
        %927 = vmatprep.subr.bf16.mxu0 0
        %928 = vmatpush2.bf16.msra.mxu0 0
        %929 = vmatprep.subr.bf16.mxu0 0
        %930 = vmatpush2.bf16.msra.mxu0 0
        %931 = vmatprep.subr.bf16.mxu0 0
        %932 = vmatpush2.bf16.msra.mxu0 0
        %933 = vmatprep.subr.bf16.mxu0 0
        %934 = vmatpush2.bf16.msra.mxu0 0
        %935 = vmatprep.subr.bf16.mxu0 0
        %936 = vmatpush2.bf16.msra.mxu0 0
        %937 = vmatprep.mubr.bf16.mxu0 0
        %938 = vmatmul.mubr.bf16.gmra.mxu0 %v894
        %v939 = vpop.f32.mrf.mxu0
        %v940 = vadd.f32 %v880, %v939
        %v941 = vpop.f32.mrf.mxu0
        %v942 = vpop.f32.mrf.mxu0
        %v943 = vadd.f32 %v880, %v942
        %v944 = vpop.f32.mrf.mxu0
        %945 = vmatprep.mubr.bf16.mxu0 0
        %946 = vmatmul.mubr.bf16.gmra.mxu0 %v897
        %v947 = vpop.f32.mrf.mxu0
        %v948 = vadd.f32 %v880, %v947
        %v949 = vpop.f32.mrf.mxu0
        %v950 = vpop.f32.mrf.mxu0
        %v951 = vadd.f32 %v880, %v950
        %v952 = vpop.f32.mrf.mxu0
        %953 = vmatprep.mubr.bf16.mxu0 0
        %954 = vmatmul.mubr.bf16.gmra.mxu0 %v900
        %v955 = vpop.f32.mrf.mxu0
        %v956 = vadd.f32 %v880, %v955
        %v957 = vpop.f32.mrf.mxu0
        %v958 = vpop.f32.mrf.mxu0
        %v959 = vadd.f32 %v880, %v958
        %v960 = vpop.f32.mrf.mxu0
        %961 = vmatprep.mubr.bf16.mxu0 0
        %962 = vmatmul.mubr.bf16.gmra.mxu0 %v903
        %v963 = vpop.f32.mrf.mxu0
        %v964 = vadd.f32 %v880, %v963
        %v965 = vpop.f32.mrf.mxu0
        %v966 = vpop.f32.mrf.mxu0
        %v967 = vadd.f32 %v880, %v966
        %v968 = vpop.f32.mrf.mxu0
        %969 = vdwg.mxu0
        %v970 = vmax.f32 %v940, 0.0
        %v971 = vmax.f32 %v943, 0.0
        %v972 = vmax.f32 %v948, 0.0
        %v973 = vmax.f32 %v951, 0.0
        %v974 = vmax.f32 %v956, 0.0
        %v975 = vmax.f32 %v959, 0.0
        %v976 = vmax.f32 %v964, 0.0
        %v977 = vmax.f32 %v967, 0.0
        %v978 = vpack.c.bf16 %v971, %v970
        %v979 = vpack.c.bf16 %v973, %v972
        %v980 = vpack.c.bf16 %v975, %v974
        %v981 = vpack.c.bf16 %v977, %v976
        %s982 = scalar_lea.vmem %s5, 16
        %v983 = vld [vmem:[%s982] sm:$0xf]
        %v984 = vld [vmem:[%s982 + $0x4] sm:$0xf]
        %v985 = vld [vmem:[%s982 + $0x8] sm:$0xf]
        %v986 = vld [vmem:[%s982 + $0xc] sm:$0xf]
        %v991 = vunpack.c.l.b16 %v983
        %v992 = vunpack.c.l.b16 %v984
        %v993 = vunpack.c.l.b16 %v985
        %v994 = vunpack.c.l.b16 %v986
        %v995 = vpack.c.b16 %v992, %v991
        %v996 = vpack.c.b16 %v994, %v993
        %v1000 = vsel %vm492, %v978, 0
        %v1003 = vsel %vm492, %v979, 0
        %v1006 = vsel %vm492, %v980, 0
        %v1009 = vsel %vm492, %v981, 0
        %1011 = vmatprep.subr.bf16.mxu0 0
        %1012 = vmatpush1.bf16.msra.mxu0 0
        %1013 = vmatprep.subr.bf16.mxu0 0
        %1014 = vmatpush1.bf16.msra.mxu0 0
        %1015 = vmatprep.subr.bf16.mxu0 0
        %1016 = vmatpush1.bf16.msra.mxu0 0
        %1017 = vmatprep.subr.bf16.mxu0 0
        %1018 = vmatpush1.bf16.msra.mxu0 0
        %1019 = vmatprep.subr.bf16.mxu0 0
        %1020 = vmatpush1.bf16.msra.mxu0 0
        %1021 = vmatprep.subr.bf16.mxu0 0
        %1022 = vmatpush1.bf16.msra.mxu0 0
        %1023 = vmatprep.subr.bf16.mxu0 0
        %1024 = vmatpush1.bf16.msra.mxu0 %v996
        %1025 = vmatprep.subr.bf16.mxu0 0
        %1026 = vmatpush1.bf16.msra.mxu0 %v995
        %1027 = vmatprep.subr.bf16.mxu0 0
        %1028 = vmatpush2.bf16.msra.mxu0 0
        %1029 = vmatprep.subr.bf16.mxu0 0
        %1030 = vmatpush2.bf16.msra.mxu0 0
        %1031 = vmatprep.subr.bf16.mxu0 0
        %1032 = vmatpush2.bf16.msra.mxu0 0
        %1033 = vmatprep.subr.bf16.mxu0 0
        %1034 = vmatpush2.bf16.msra.mxu0 0
        %1035 = vmatprep.subr.bf16.mxu0 0
        %1036 = vmatpush2.bf16.msra.mxu0 0
        %1037 = vmatprep.subr.bf16.mxu0 0
        %1038 = vmatpush2.bf16.msra.mxu0 0
        %1039 = vmatprep.subr.bf16.mxu0 0
        %1040 = vmatpush2.bf16.msra.mxu0 0
        %1041 = vmatprep.subr.bf16.mxu0 0
        %1042 = vmatpush2.bf16.msra.mxu0 0
        %1043 = vmatprep.mubr.bf16.mxu0 0
        %1044 = vmatmul.mubr.bf16.gmra.mxu0 %v1000
        %v1045 = vpop.f32.mrf.mxu0
        %v1046 = vadd.f32 0.0, %v1045
        %v1047 = vpop.f32.mrf.mxu0
        %v1048 = vpop.f32.mrf.mxu0
        %v1049 = vadd.f32 0.0, %v1048
        %v1050 = vpop.f32.mrf.mxu0
        %1051 = vmatprep.mubr.bf16.mxu0 0
        %1052 = vmatmul.mubr.bf16.gmra.mxu0 %v1003
        %v1053 = vpop.f32.mrf.mxu0
        %v1054 = vadd.f32 0.0, %v1053
        %v1055 = vpop.f32.mrf.mxu0
        %v1056 = vpop.f32.mrf.mxu0
        %v1057 = vadd.f32 0.0, %v1056
        %v1058 = vpop.f32.mrf.mxu0
        %1059 = vmatprep.mubr.bf16.mxu0 0
        %1060 = vmatmul.mubr.bf16.gmra.mxu0 %v1006
        %v1061 = vpop.f32.mrf.mxu0
        %v1062 = vadd.f32 0.0, %v1061
        %v1063 = vpop.f32.mrf.mxu0
        %v1064 = vpop.f32.mrf.mxu0
        %v1065 = vadd.f32 0.0, %v1064
        %v1066 = vpop.f32.mrf.mxu0
        %1067 = vmatprep.mubr.bf16.mxu0 0
        %1068 = vmatmul.mubr.bf16.gmra.mxu0 %v1009
        %v1069 = vpop.f32.mrf.mxu0
        %v1070 = vadd.f32 0.0, %v1069
        %v1071 = vpop.f32.mrf.mxu0
        %v1072 = vpop.f32.mrf.mxu0
        %v1073 = vadd.f32 0.0, %v1072
        %v1074 = vpop.f32.mrf.mxu0
        %1075 = vdwg.mxu0
        %v1080 = vunpack.c.l.b16 %v687
        %v1081 = vunpack.c.l.b16 %v688
        %v1082 = vunpack.c.l.b16 %v689
        %v1083 = vunpack.c.l.b16 %v690
        %v1084 = vpack.c.b16 %v1081, %v1080
        %v1085 = vpack.c.b16 %v1083, %v1082
        %v1089 = vsel %vm492, %v683, 0
        %v1092 = vsel %vm492, %v684, 0
        %v1095 = vsel %vm492, %v685, 0
        %v1098 = vsel %vm492, %v686, 0
        %1100 = vmatprep.subr.bf16.mxu0 0
        %1101 = vmatpush1.bf16.msra.mxu0 0
        %1102 = vmatprep.subr.bf16.mxu0 0
        %1103 = vmatpush1.bf16.msra.mxu0 0
        %1104 = vmatprep.subr.bf16.mxu0 0
        %1105 = vmatpush1.bf16.msra.mxu0 0
        %1106 = vmatprep.subr.bf16.mxu0 0
        %1107 = vmatpush1.bf16.msra.mxu0 0
        %1108 = vmatprep.subr.bf16.mxu0 0
        %1109 = vmatpush1.bf16.msra.mxu0 0
        %1110 = vmatprep.subr.bf16.mxu0 0
        %1111 = vmatpush1.bf16.msra.mxu0 0
        %1112 = vmatprep.subr.bf16.mxu0 0
        %1113 = vmatpush1.bf16.msra.mxu0 %v1085
        %1114 = vmatprep.subr.bf16.mxu0 0
        %1115 = vmatpush1.bf16.msra.mxu0 %v1084
        %1116 = vmatprep.subr.bf16.mxu0 0
        %1117 = vmatpush2.bf16.msra.mxu0 0
        %1118 = vmatprep.subr.bf16.mxu0 0
        %1119 = vmatpush2.bf16.msra.mxu0 0
        %1120 = vmatprep.subr.bf16.mxu0 0
        %1121 = vmatpush2.bf16.msra.mxu0 0
        %1122 = vmatprep.subr.bf16.mxu0 0
        %1123 = vmatpush2.bf16.msra.mxu0 0
        %1124 = vmatprep.subr.bf16.mxu0 0
        %1125 = vmatpush2.bf16.msra.mxu0 0
        %1126 = vmatprep.subr.bf16.mxu0 0
        %1127 = vmatpush2.bf16.msra.mxu0 0
        %1128 = vmatprep.subr.bf16.mxu0 0
        %1129 = vmatpush2.bf16.msra.mxu0 0
        %1130 = vmatprep.subr.bf16.mxu0 0
        %1131 = vmatpush2.bf16.msra.mxu0 0
        %1132 = vmatprep.mubr.bf16.mxu0 0
        %1133 = vmatmul.mubr.bf16.gmra.mxu0 %v1089
        %v1134 = vpop.f32.mrf.mxu0
        %v1135 = vadd.f32 %v1046, %v1134
        %v1136 = vpop.f32.mrf.mxu0
        %v1137 = vpop.f32.mrf.mxu0
        %v1138 = vadd.f32 %v1049, %v1137
        %v1139 = vpop.f32.mrf.mxu0
        %1140 = vmatprep.mubr.bf16.mxu0 0
        %1141 = vmatmul.mubr.bf16.gmra.mxu0 %v1092
        %v1142 = vpop.f32.mrf.mxu0
        %v1143 = vadd.f32 %v1054, %v1142
        %v1144 = vpop.f32.mrf.mxu0
        %v1145 = vpop.f32.mrf.mxu0
        %v1146 = vadd.f32 %v1057, %v1145
        %v1147 = vpop.f32.mrf.mxu0
        %1148 = vmatprep.mubr.bf16.mxu0 0
        %1149 = vmatmul.mubr.bf16.gmra.mxu0 %v1095
        %v1150 = vpop.f32.mrf.mxu0
        %v1151 = vadd.f32 %v1062, %v1150
        %v1152 = vpop.f32.mrf.mxu0
        %v1153 = vpop.f32.mrf.mxu0
        %v1154 = vadd.f32 %v1065, %v1153
        %v1155 = vpop.f32.mrf.mxu0
        %1156 = vmatprep.mubr.bf16.mxu0 0
        %1157 = vmatmul.mubr.bf16.gmra.mxu0 %v1098
        %v1158 = vpop.f32.mrf.mxu0
        %v1159 = vadd.f32 %v1070, %v1158
        %v1160 = vpop.f32.mrf.mxu0
        %v1161 = vpop.f32.mrf.mxu0
        %v1162 = vadd.f32 %v1073, %v1161
        %v1163 = vpop.f32.mrf.mxu0
        %1164 = vdwg.mxu0
        %s1165 = scalar_lea.vmem %s3, 64
        %v1166 = vld [vmem:[%s1165] sm:$0xf]
        %v1167 = vld [vmem:[%s1165 + $0x4] sm:$0xf]
        %v1168 = vld [vmem:[%s1165 + $0x8] sm:$0xf]
        %v1169 = vld [vmem:[%s1165 + $0xc] sm:$0xf]
        %s1170 = scalar_lea.vmem %s3, 80
        %v1171 = vld [vmem:[%s1170] sm:$0xf]
        %v1172 = vld [vmem:[%s1170 + $0x4] sm:$0xf]
        %v1173 = vld [vmem:[%s1170 + $0x8] sm:$0xf]
        %v1174 = vld [vmem:[%s1170 + $0xc] sm:$0xf]
        %v1175 = vld [vmem:[#allocation5 + $0x4] sm:$0x1]
        %v1176 = vld [vmem:[#allocation5 + $0x5] sm:$0x1]
        %1177 = vmatprep.subr.bf16.mxu0 0
        %1178 = vmatpush1.bf16.msra.mxu0 0
        %1179 = vmatprep.subr.bf16.mxu0 0
        %1180 = vmatpush1.bf16.msra.mxu0 0
        %1181 = vmatprep.subr.bf16.mxu0 0
        %1182 = vmatpush1.bf16.msra.mxu0 0
        %1183 = vmatprep.subr.bf16.mxu0 0
        %1184 = vmatpush1.bf16.msra.mxu0 0
        %1185 = vmatprep.subr.bf16.mxu0 0
        %1186 = vmatpush1.bf16.msra.mxu0 %v981
        %1187 = vmatprep.subr.bf16.mxu0 0
        %1188 = vmatpush1.bf16.msra.mxu0 %v980
        %1189 = vmatprep.subr.bf16.mxu0 0
        %1190 = vmatpush1.bf16.msra.mxu0 %v979
        %1191 = vmatprep.subr.bf16.mxu0 0
        %1192 = vmatpush1.bf16.msra.mxu0 %v978
        %1193 = vmatprep.subr.bf16.mxu0 0
        %1194 = vmatpush2.bf16.msra.mxu0 0
        %1195 = vmatprep.subr.bf16.mxu0 0
        %1196 = vmatpush2.bf16.msra.mxu0 0
        %1197 = vmatprep.subr.bf16.mxu0 0
        %1198 = vmatpush2.bf16.msra.mxu0 0
        %1199 = vmatprep.subr.bf16.mxu0 0
        %1200 = vmatpush2.bf16.msra.mxu0 0
        %1201 = vmatprep.subr.bf16.mxu0 0
        %1202 = vmatpush2.bf16.msra.mxu0 0
        %1203 = vmatprep.subr.bf16.mxu0 0
        %1204 = vmatpush2.bf16.msra.mxu0 0
        %1205 = vmatprep.subr.bf16.mxu0 0
        %1206 = vmatpush2.bf16.msra.mxu0 0
        %1207 = vmatprep.subr.bf16.mxu0 0
        %1208 = vmatpush2.bf16.msra.mxu0 0
        %1209 = vmatprep.mubr.bf16.mxu0 0
        %1210 = vmatmul.mubr.bf16.gmra.mxu0 %v396
        %v1211 = vpop.f32.mrf.mxu0
        %v1212 = vadd.f32 0.0, %v1211
        %v1213 = vpop.f32.mrf.mxu0
        %v1214 = vpop.f32.mrf.mxu0
        %v1215 = vadd.f32 0.0, %v1214
        %v1216 = vpop.f32.mrf.mxu0
        %1217 = vmatprep.mubr.bf16.mxu0 0
        %1218 = vmatmul.mubr.bf16.gmra.mxu0 %v399
        %v1219 = vpop.f32.mrf.mxu0
        %v1220 = vadd.f32 0.0, %v1219
        %v1221 = vpop.f32.mrf.mxu0
        %v1222 = vpop.f32.mrf.mxu0
        %v1223 = vadd.f32 0.0, %v1222
        %v1224 = vpop.f32.mrf.mxu0
        %1225 = vmatprep.mubr.bf16.mxu0 0
        %1226 = vmatmul.mubr.bf16.gmra.mxu0 %v402
        %v1227 = vpop.f32.mrf.mxu0
        %v1228 = vadd.f32 0.0, %v1227
        %v1229 = vpop.f32.mrf.mxu0
        %v1230 = vpop.f32.mrf.mxu0
        %v1231 = vadd.f32 0.0, %v1230
        %v1232 = vpop.f32.mrf.mxu0
        %1233 = vmatprep.mubr.bf16.mxu0 0
        %1234 = vmatmul.mubr.bf16.gmra.mxu0 %v405
        %v1235 = vpop.f32.mrf.mxu0
        %v1236 = vadd.f32 0.0, %v1235
        %v1237 = vpop.f32.mrf.mxu0
        %v1238 = vpop.f32.mrf.mxu0
        %v1239 = vadd.f32 0.0, %v1238
        %v1240 = vpop.f32.mrf.mxu0
        %1241 = vdwg.mxu0
        %v1242 = vpack.c.bf16 %v1215, %v1212
        %v1243 = vpack.c.bf16 %v1223, %v1220
        %v1244 = vpack.c.bf16 %v1231, %v1228
        %v1245 = vpack.c.bf16 %v1239, %v1236
        %v1246 = vlaneseq
        %v1247 = vshrl.u32 %v1246, 7
        %v1248 = vsub.s32 0, %v1247
        %v1249 = vrot.slane %v1175, %v1248
        %v1254 = vunpack.c.l.b16 %v1166
        %v1255 = vunpack.c.l.b16 %v1167
        %v1256 = vunpack.c.l.b16 %v1168
        %v1257 = vunpack.c.l.b16 %v1169
        %v1258 = vpack.c.b16 %v1255, %v1254
        %v1259 = vpack.c.b16 %v1257, %v1256
        %v1263 = vsel %vm492, %v1242, 0
        %v1266 = vsel %vm492, %v1243, 0
        %v1269 = vsel %vm492, %v1244, 0
        %v1272 = vsel %vm492, %v1245, 0
        %1274 = vmatprep.subr.bf16.mxu0 0
        %1275 = vmatpush1.bf16.msra.mxu0 0
        %1276 = vmatprep.subr.bf16.mxu0 0
        %1277 = vmatpush1.bf16.msra.mxu0 0
        %1278 = vmatprep.subr.bf16.mxu0 0
        %1279 = vmatpush1.bf16.msra.mxu0 0
        %1280 = vmatprep.subr.bf16.mxu0 0
        %1281 = vmatpush1.bf16.msra.mxu0 0
        %1282 = vmatprep.subr.bf16.mxu0 0
        %1283 = vmatpush1.bf16.msra.mxu0 0
        %1284 = vmatprep.subr.bf16.mxu0 0
        %1285 = vmatpush1.bf16.msra.mxu0 0
        %1286 = vmatprep.subr.bf16.mxu0 0
        %1287 = vmatpush1.bf16.msra.mxu0 %v1259
        %1288 = vmatprep.subr.bf16.mxu0 0
        %1289 = vmatpush1.bf16.msra.mxu0 %v1258
        %1290 = vmatprep.subr.bf16.mxu0 0
        %1291 = vmatpush2.bf16.msra.mxu0 0
        %1292 = vmatprep.subr.bf16.mxu0 0
        %1293 = vmatpush2.bf16.msra.mxu0 0
        %1294 = vmatprep.subr.bf16.mxu0 0
        %1295 = vmatpush2.bf16.msra.mxu0 0
        %1296 = vmatprep.subr.bf16.mxu0 0
        %1297 = vmatpush2.bf16.msra.mxu0 0
        %1298 = vmatprep.subr.bf16.mxu0 0
        %1299 = vmatpush2.bf16.msra.mxu0 0
        %1300 = vmatprep.subr.bf16.mxu0 0
        %1301 = vmatpush2.bf16.msra.mxu0 0
        %1302 = vmatprep.subr.bf16.mxu0 0
        %1303 = vmatpush2.bf16.msra.mxu0 0
        %1304 = vmatprep.subr.bf16.mxu0 0
        %1305 = vmatpush2.bf16.msra.mxu0 0
        %1306 = vmatprep.mubr.bf16.mxu0 0
        %1307 = vmatmul.mubr.bf16.gmra.mxu0 %v1263
        %v1308 = vpop.f32.mrf.mxu0
        %v1309 = vadd.f32 %v1249, %v1308
        %v1310 = vpop.f32.mrf.mxu0
        %v1311 = vpop.f32.mrf.mxu0
        %v1312 = vadd.f32 %v1249, %v1311
        %v1313 = vpop.f32.mrf.mxu0
        %1314 = vmatprep.mubr.bf16.mxu0 0
        %1315 = vmatmul.mubr.bf16.gmra.mxu0 %v1266
        %v1316 = vpop.f32.mrf.mxu0
        %v1317 = vadd.f32 %v1249, %v1316
        %v1318 = vpop.f32.mrf.mxu0
        %v1319 = vpop.f32.mrf.mxu0
        %v1320 = vadd.f32 %v1249, %v1319
        %v1321 = vpop.f32.mrf.mxu0
        %1322 = vmatprep.mubr.bf16.mxu0 0
        %1323 = vmatmul.mubr.bf16.gmra.mxu0 %v1269
        %v1324 = vpop.f32.mrf.mxu0
        %v1325 = vadd.f32 %v1249, %v1324
        %v1326 = vpop.f32.mrf.mxu0
        %v1327 = vpop.f32.mrf.mxu0
        %v1328 = vadd.f32 %v1249, %v1327
        %v1329 = vpop.f32.mrf.mxu0
        %1330 = vmatprep.mubr.bf16.mxu0 0
        %1331 = vmatmul.mubr.bf16.gmra.mxu0 %v1272
        %v1332 = vpop.f32.mrf.mxu0
        %v1333 = vadd.f32 %v1249, %v1332
        %v1334 = vpop.f32.mrf.mxu0
        %v1335 = vpop.f32.mrf.mxu0
        %v1336 = vadd.f32 %v1249, %v1335
        %v1337 = vpop.f32.mrf.mxu0
        %1338 = vdwg.mxu0
        %v1339 = vmax.f32 %v1309, 0.0
        %v1340 = vmax.f32 %v1312, 0.0
        %v1341 = vmax.f32 %v1317, 0.0
        %v1342 = vmax.f32 %v1320, 0.0
        %v1343 = vmax.f32 %v1325, 0.0
        %v1344 = vmax.f32 %v1328, 0.0
        %v1345 = vmax.f32 %v1333, 0.0
        %v1346 = vmax.f32 %v1336, 0.0
        %v1347 = vpack.c.bf16 %v1340, %v1339
        %v1348 = vpack.c.bf16 %v1342, %v1341
        %v1349 = vpack.c.bf16 %v1344, %v1343
        %v1350 = vpack.c.bf16 %v1346, %v1345
        %v1351 = vlaneseq
        %v1352 = vshrl.u32 %v1351, 7
        %v1353 = vsub.s32 0, %v1352
        %v1354 = vrot.slane %v1176, %v1353
        %v1359 = vunpack.c.l.b16 %v1171
        %v1360 = vunpack.c.l.b16 %v1172
        %v1361 = vunpack.c.l.b16 %v1173
        %v1362 = vunpack.c.l.b16 %v1174
        %v1363 = vpack.c.b16 %v1360, %v1359
        %v1364 = vpack.c.b16 %v1362, %v1361
        %v1368 = vsel %vm492, %v1347, 0
        %v1371 = vsel %vm492, %v1348, 0
        %v1374 = vsel %vm492, %v1349, 0
        %v1377 = vsel %vm492, %v1350, 0
        %1379 = vmatprep.subr.bf16.mxu0 0
        %1380 = vmatpush1.bf16.msra.mxu0 0
        %1381 = vmatprep.subr.bf16.mxu0 0
        %1382 = vmatpush1.bf16.msra.mxu0 0
        %1383 = vmatprep.subr.bf16.mxu0 0
        %1384 = vmatpush1.bf16.msra.mxu0 0
        %1385 = vmatprep.subr.bf16.mxu0 0
        %1386 = vmatpush1.bf16.msra.mxu0 0
        %1387 = vmatprep.subr.bf16.mxu0 0
        %1388 = vmatpush1.bf16.msra.mxu0 0
        %1389 = vmatprep.subr.bf16.mxu0 0
        %1390 = vmatpush1.bf16.msra.mxu0 0
        %1391 = vmatprep.subr.bf16.mxu0 0
        %1392 = vmatpush1.bf16.msra.mxu0 %v1364
        %1393 = vmatprep.subr.bf16.mxu0 0
        %1394 = vmatpush1.bf16.msra.mxu0 %v1363
        %1395 = vmatprep.subr.bf16.mxu0 0
        %1396 = vmatpush2.bf16.msra.mxu0 0
        %1397 = vmatprep.subr.bf16.mxu0 0
        %1398 = vmatpush2.bf16.msra.mxu0 0
        %1399 = vmatprep.subr.bf16.mxu0 0
        %1400 = vmatpush2.bf16.msra.mxu0 0
        %1401 = vmatprep.subr.bf16.mxu0 0
        %1402 = vmatpush2.bf16.msra.mxu0 0
        %1403 = vmatprep.subr.bf16.mxu0 0
        %1404 = vmatpush2.bf16.msra.mxu0 0
        %1405 = vmatprep.subr.bf16.mxu0 0
        %1406 = vmatpush2.bf16.msra.mxu0 0
        %1407 = vmatprep.subr.bf16.mxu0 0
        %1408 = vmatpush2.bf16.msra.mxu0 0
        %1409 = vmatprep.subr.bf16.mxu0 0
        %1410 = vmatpush2.bf16.msra.mxu0 0
        %1411 = vmatprep.mubr.bf16.mxu0 0
        %1412 = vmatmul.mubr.bf16.gmra.mxu0 %v1368
        %v1413 = vpop.f32.mrf.mxu0
        %v1414 = vadd.f32 %v1354, %v1413
        %v1415 = vpop.f32.mrf.mxu0
        %v1416 = vpop.f32.mrf.mxu0
        %v1417 = vadd.f32 %v1354, %v1416
        %v1418 = vpop.f32.mrf.mxu0
        %1419 = vmatprep.mubr.bf16.mxu0 0
        %1420 = vmatmul.mubr.bf16.gmra.mxu0 %v1371
        %v1421 = vpop.f32.mrf.mxu0
        %v1422 = vadd.f32 %v1354, %v1421
        %v1423 = vpop.f32.mrf.mxu0
        %v1424 = vpop.f32.mrf.mxu0
        %v1425 = vadd.f32 %v1354, %v1424
        %v1426 = vpop.f32.mrf.mxu0
        %1427 = vmatprep.mubr.bf16.mxu0 0
        %1428 = vmatmul.mubr.bf16.gmra.mxu0 %v1374
        %v1429 = vpop.f32.mrf.mxu0
        %v1430 = vadd.f32 %v1354, %v1429
        %v1431 = vpop.f32.mrf.mxu0
        %v1432 = vpop.f32.mrf.mxu0
        %v1433 = vadd.f32 %v1354, %v1432
        %v1434 = vpop.f32.mrf.mxu0
        %1435 = vmatprep.mubr.bf16.mxu0 0
        %1436 = vmatmul.mubr.bf16.gmra.mxu0 %v1377
        %v1437 = vpop.f32.mrf.mxu0
        %v1438 = vadd.f32 %v1354, %v1437
        %v1439 = vpop.f32.mrf.mxu0
        %v1440 = vpop.f32.mrf.mxu0
        %v1441 = vadd.f32 %v1354, %v1440
        %v1442 = vpop.f32.mrf.mxu0
        %1443 = vdwg.mxu0
        %v1444 = vmax.f32 %v1414, 0.0
        %v1445 = vmax.f32 %v1417, 0.0
        %v1446 = vmax.f32 %v1422, 0.0
        %v1447 = vmax.f32 %v1425, 0.0
        %v1448 = vmax.f32 %v1430, 0.0
        %v1449 = vmax.f32 %v1433, 0.0
        %v1450 = vmax.f32 %v1438, 0.0
        %v1451 = vmax.f32 %v1441, 0.0
        %v1452 = vpack.c.bf16 %v1445, %v1444
        %v1453 = vpack.c.bf16 %v1447, %v1446
        %v1454 = vpack.c.bf16 %v1449, %v1448
        %v1455 = vpack.c.bf16 %v1451, %v1450
        %s1456 = scalar_lea.vmem %s5, 32
        %v1457 = vld [vmem:[%s1456] sm:$0xf]
        %v1458 = vld [vmem:[%s1456 + $0x4] sm:$0xf]
        %v1459 = vld [vmem:[%s1456 + $0x8] sm:$0xf]
        %v1460 = vld [vmem:[%s1456 + $0xc] sm:$0xf]
        %v1465 = vunpack.c.l.b16 %v1457
        %v1466 = vunpack.c.l.b16 %v1458
        %v1467 = vunpack.c.l.b16 %v1459
        %v1468 = vunpack.c.l.b16 %v1460
        %v1469 = vpack.c.b16 %v1466, %v1465
        %v1470 = vpack.c.b16 %v1468, %v1467
        %v1474 = vsel %vm492, %v1452, 0
        %v1477 = vsel %vm492, %v1453, 0
        %v1480 = vsel %vm492, %v1454, 0
        %v1483 = vsel %vm492, %v1455, 0
        %1485 = vmatprep.subr.bf16.mxu0 0
        %1486 = vmatpush1.bf16.msra.mxu0 0
        %1487 = vmatprep.subr.bf16.mxu0 0
        %1488 = vmatpush1.bf16.msra.mxu0 0
        %1489 = vmatprep.subr.bf16.mxu0 0
        %1490 = vmatpush1.bf16.msra.mxu0 0
        %1491 = vmatprep.subr.bf16.mxu0 0
        %1492 = vmatpush1.bf16.msra.mxu0 0
        %1493 = vmatprep.subr.bf16.mxu0 0
        %1494 = vmatpush1.bf16.msra.mxu0 0
        %1495 = vmatprep.subr.bf16.mxu0 0
        %1496 = vmatpush1.bf16.msra.mxu0 0
        %1497 = vmatprep.subr.bf16.mxu0 0
        %1498 = vmatpush1.bf16.msra.mxu0 %v1470
        %1499 = vmatprep.subr.bf16.mxu0 0
        %1500 = vmatpush1.bf16.msra.mxu0 %v1469
        %1501 = vmatprep.subr.bf16.mxu0 0
        %1502 = vmatpush2.bf16.msra.mxu0 0
        %1503 = vmatprep.subr.bf16.mxu0 0
        %1504 = vmatpush2.bf16.msra.mxu0 0
        %1505 = vmatprep.subr.bf16.mxu0 0
        %1506 = vmatpush2.bf16.msra.mxu0 0
        %1507 = vmatprep.subr.bf16.mxu0 0
        %1508 = vmatpush2.bf16.msra.mxu0 0
        %1509 = vmatprep.subr.bf16.mxu0 0
        %1510 = vmatpush2.bf16.msra.mxu0 0
        %1511 = vmatprep.subr.bf16.mxu0 0
        %1512 = vmatpush2.bf16.msra.mxu0 0
        %1513 = vmatprep.subr.bf16.mxu0 0
        %1514 = vmatpush2.bf16.msra.mxu0 0
        %1515 = vmatprep.subr.bf16.mxu0 0
        %1516 = vmatpush2.bf16.msra.mxu0 0
        %1517 = vmatprep.mubr.bf16.mxu0 0
        %1518 = vmatmul.mubr.bf16.gmra.mxu0 %v1474
        %v1519 = vpop.f32.mrf.mxu0
        %v1520 = vadd.f32 0.0, %v1519
        %v1521 = vpop.f32.mrf.mxu0
        %v1522 = vpop.f32.mrf.mxu0
        %v1523 = vadd.f32 0.0, %v1522
        %v1524 = vpop.f32.mrf.mxu0
        %1525 = vmatprep.mubr.bf16.mxu0 0
        %1526 = vmatmul.mubr.bf16.gmra.mxu0 %v1477
        %v1527 = vpop.f32.mrf.mxu0
        %v1528 = vadd.f32 0.0, %v1527
        %v1529 = vpop.f32.mrf.mxu0
        %v1530 = vpop.f32.mrf.mxu0
        %v1531 = vadd.f32 0.0, %v1530
        %v1532 = vpop.f32.mrf.mxu0
        %1533 = vmatprep.mubr.bf16.mxu0 0
        %1534 = vmatmul.mubr.bf16.gmra.mxu0 %v1480
        %v1535 = vpop.f32.mrf.mxu0
        %v1536 = vadd.f32 0.0, %v1535
        %v1537 = vpop.f32.mrf.mxu0
        %v1538 = vpop.f32.mrf.mxu0
        %v1539 = vadd.f32 0.0, %v1538
        %v1540 = vpop.f32.mrf.mxu0
        %1541 = vmatprep.mubr.bf16.mxu0 0
        %1542 = vmatmul.mubr.bf16.gmra.mxu0 %v1483
        %v1543 = vpop.f32.mrf.mxu0
        %v1544 = vadd.f32 0.0, %v1543
        %v1545 = vpop.f32.mrf.mxu0
        %v1546 = vpop.f32.mrf.mxu0
        %v1547 = vadd.f32 0.0, %v1546
        %v1548 = vpop.f32.mrf.mxu0
        %1549 = vdwg.mxu0
        %v1550 = vadd.f32 %v1135, %v1520
        %v1551 = vadd.f32 %v1138, %v1523
        %v1552 = vadd.f32 %v1143, %v1528
        %v1553 = vadd.f32 %v1146, %v1531
        %v1554 = vadd.f32 %v1151, %v1536
        %v1555 = vadd.f32 %v1154, %v1539
        %v1556 = vadd.f32 %v1159, %v1544
        %v1557 = vadd.f32 %v1162, %v1547
        %s1558 = scalar_lea.vmem %s3, 96
        %v1559 = vld [vmem:[%s1558] sm:$0xf]
        %v1560 = vld [vmem:[%s1558 + $0x4] sm:$0xf]
        %v1561 = vld [vmem:[%s1558 + $0x8] sm:$0xf]
        %v1562 = vld [vmem:[%s1558 + $0xc] sm:$0xf]
        %s1563 = scalar_lea.vmem %s3, 112
        %v1564 = vld [vmem:[%s1563] sm:$0xf]
        %v1565 = vld [vmem:[%s1563 + $0x4] sm:$0xf]
        %v1566 = vld [vmem:[%s1563 + $0x8] sm:$0xf]
        %v1567 = vld [vmem:[%s1563 + $0xc] sm:$0xf]
        %v1568 = vld [vmem:[#allocation5 + $0x6] sm:$0x1]
        %v1569 = vld [vmem:[#allocation5 + $0x7] sm:$0x1]
        %1570 = vmatprep.subr.bf16.mxu0 0
        %1571 = vmatpush1.bf16.msra.mxu0 0
        %1572 = vmatprep.subr.bf16.mxu0 0
        %1573 = vmatpush1.bf16.msra.mxu0 0
        %1574 = vmatprep.subr.bf16.mxu0 0
        %1575 = vmatpush1.bf16.msra.mxu0 0
        %1576 = vmatprep.subr.bf16.mxu0 0
        %1577 = vmatpush1.bf16.msra.mxu0 0
        %1578 = vmatprep.subr.bf16.mxu0 0
        %1579 = vmatpush1.bf16.msra.mxu0 %v1455
        %1580 = vmatprep.subr.bf16.mxu0 0
        %1581 = vmatpush1.bf16.msra.mxu0 %v1454
        %1582 = vmatprep.subr.bf16.mxu0 0
        %1583 = vmatpush1.bf16.msra.mxu0 %v1453
        %1584 = vmatprep.subr.bf16.mxu0 0
        %1585 = vmatpush1.bf16.msra.mxu0 %v1452
        %1586 = vmatprep.subr.bf16.mxu0 0
        %1587 = vmatpush2.bf16.msra.mxu0 0
        %1588 = vmatprep.subr.bf16.mxu0 0
        %1589 = vmatpush2.bf16.msra.mxu0 0
        %1590 = vmatprep.subr.bf16.mxu0 0
        %1591 = vmatpush2.bf16.msra.mxu0 0
        %1592 = vmatprep.subr.bf16.mxu0 0
        %1593 = vmatpush2.bf16.msra.mxu0 0
        %1594 = vmatprep.subr.bf16.mxu0 0
        %1595 = vmatpush2.bf16.msra.mxu0 0
        %1596 = vmatprep.subr.bf16.mxu0 0
        %1597 = vmatpush2.bf16.msra.mxu0 0
        %1598 = vmatprep.subr.bf16.mxu0 0
        %1599 = vmatpush2.bf16.msra.mxu0 0
        %1600 = vmatprep.subr.bf16.mxu0 0
        %1601 = vmatpush2.bf16.msra.mxu0 0
        %1602 = vmatprep.mubr.bf16.mxu0 0
        %1603 = vmatmul.mubr.bf16.gmra.mxu0 %v396
        %v1604 = vpop.f32.mrf.mxu0
        %v1605 = vadd.f32 0.0, %v1604
        %v1606 = vpop.f32.mrf.mxu0
        %v1607 = vpop.f32.mrf.mxu0
        %v1608 = vadd.f32 0.0, %v1607
        %v1609 = vpop.f32.mrf.mxu0
        %1610 = vmatprep.mubr.bf16.mxu0 0
        %1611 = vmatmul.mubr.bf16.gmra.mxu0 %v399
        %v1612 = vpop.f32.mrf.mxu0
        %v1613 = vadd.f32 0.0, %v1612
        %v1614 = vpop.f32.mrf.mxu0
        %v1615 = vpop.f32.mrf.mxu0
        %v1616 = vadd.f32 0.0, %v1615
        %v1617 = vpop.f32.mrf.mxu0
        %1618 = vmatprep.mubr.bf16.mxu0 0
        %1619 = vmatmul.mubr.bf16.gmra.mxu0 %v402
        %v1620 = vpop.f32.mrf.mxu0
        %v1621 = vadd.f32 0.0, %v1620
        %v1622 = vpop.f32.mrf.mxu0
        %v1623 = vpop.f32.mrf.mxu0
        %v1624 = vadd.f32 0.0, %v1623
        %v1625 = vpop.f32.mrf.mxu0
        %1626 = vmatprep.mubr.bf16.mxu0 0
        %1627 = vmatmul.mubr.bf16.gmra.mxu0 %v405
        %v1628 = vpop.f32.mrf.mxu0
        %v1629 = vadd.f32 0.0, %v1628
        %v1630 = vpop.f32.mrf.mxu0
        %v1631 = vpop.f32.mrf.mxu0
        %v1632 = vadd.f32 0.0, %v1631
        %v1633 = vpop.f32.mrf.mxu0
        %1634 = vdwg.mxu0
        %v1635 = vpack.c.bf16 %v1608, %v1605
        %v1636 = vpack.c.bf16 %v1616, %v1613
        %v1637 = vpack.c.bf16 %v1624, %v1621
        %v1638 = vpack.c.bf16 %v1632, %v1629
        %v1639 = vlaneseq
        %v1640 = vshrl.u32 %v1639, 7
        %v1641 = vsub.s32 0, %v1640
        %v1642 = vrot.slane %v1568, %v1641
        %v1647 = vunpack.c.l.b16 %v1559
        %v1648 = vunpack.c.l.b16 %v1560
        %v1649 = vunpack.c.l.b16 %v1561
        %v1650 = vunpack.c.l.b16 %v1562
        %v1651 = vpack.c.b16 %v1648, %v1647
        %v1652 = vpack.c.b16 %v1650, %v1649
        %v1656 = vsel %vm492, %v1635, 0
        %v1659 = vsel %vm492, %v1636, 0
        %v1662 = vsel %vm492, %v1637, 0
        %v1665 = vsel %vm492, %v1638, 0
        %1667 = vmatprep.subr.bf16.mxu0 0
        %1668 = vmatpush1.bf16.msra.mxu0 0
        %1669 = vmatprep.subr.bf16.mxu0 0
        %1670 = vmatpush1.bf16.msra.mxu0 0
        %1671 = vmatprep.subr.bf16.mxu0 0
        %1672 = vmatpush1.bf16.msra.mxu0 0
        %1673 = vmatprep.subr.bf16.mxu0 0
        %1674 = vmatpush1.bf16.msra.mxu0 0
        %1675 = vmatprep.subr.bf16.mxu0 0
        %1676 = vmatpush1.bf16.msra.mxu0 0
        %1677 = vmatprep.subr.bf16.mxu0 0
        %1678 = vmatpush1.bf16.msra.mxu0 0
        %1679 = vmatprep.subr.bf16.mxu0 0
        %1680 = vmatpush1.bf16.msra.mxu0 %v1652
        %1681 = vmatprep.subr.bf16.mxu0 0
        %1682 = vmatpush1.bf16.msra.mxu0 %v1651
        %1683 = vmatprep.subr.bf16.mxu0 0
        %1684 = vmatpush2.bf16.msra.mxu0 0
        %1685 = vmatprep.subr.bf16.mxu0 0
        %1686 = vmatpush2.bf16.msra.mxu0 0
        %1687 = vmatprep.subr.bf16.mxu0 0
        %1688 = vmatpush2.bf16.msra.mxu0 0
        %1689 = vmatprep.subr.bf16.mxu0 0
        %1690 = vmatpush2.bf16.msra.mxu0 0
        %1691 = vmatprep.subr.bf16.mxu0 0
        %1692 = vmatpush2.bf16.msra.mxu0 0
        %1693 = vmatprep.subr.bf16.mxu0 0
        %1694 = vmatpush2.bf16.msra.mxu0 0
        %1695 = vmatprep.subr.bf16.mxu0 0
        %1696 = vmatpush2.bf16.msra.mxu0 0
        %1697 = vmatprep.subr.bf16.mxu0 0
        %1698 = vmatpush2.bf16.msra.mxu0 0
        %1699 = vmatprep.mubr.bf16.mxu0 0
        %1700 = vmatmul.mubr.bf16.gmra.mxu0 %v1656
        %v1701 = vpop.f32.mrf.mxu0
        %v1702 = vadd.f32 %v1642, %v1701
        %v1703 = vpop.f32.mrf.mxu0
        %v1704 = vpop.f32.mrf.mxu0
        %v1705 = vadd.f32 %v1642, %v1704
        %v1706 = vpop.f32.mrf.mxu0
        %1707 = vmatprep.mubr.bf16.mxu0 0
        %1708 = vmatmul.mubr.bf16.gmra.mxu0 %v1659
        %v1709 = vpop.f32.mrf.mxu0
        %v1710 = vadd.f32 %v1642, %v1709
        %v1711 = vpop.f32.mrf.mxu0
        %v1712 = vpop.f32.mrf.mxu0
        %v1713 = vadd.f32 %v1642, %v1712
        %v1714 = vpop.f32.mrf.mxu0
        %1715 = vmatprep.mubr.bf16.mxu0 0
        %1716 = vmatmul.mubr.bf16.gmra.mxu0 %v1662
        %v1717 = vpop.f32.mrf.mxu0
        %v1718 = vadd.f32 %v1642, %v1717
        %v1719 = vpop.f32.mrf.mxu0
        %v1720 = vpop.f32.mrf.mxu0
        %v1721 = vadd.f32 %v1642, %v1720
        %v1722 = vpop.f32.mrf.mxu0
        %1723 = vmatprep.mubr.bf16.mxu0 0
        %1724 = vmatmul.mubr.bf16.gmra.mxu0 %v1665
        %v1725 = vpop.f32.mrf.mxu0
        %v1726 = vadd.f32 %v1642, %v1725
        %v1727 = vpop.f32.mrf.mxu0
        %v1728 = vpop.f32.mrf.mxu0
        %v1729 = vadd.f32 %v1642, %v1728
        %v1730 = vpop.f32.mrf.mxu0
        %1731 = vdwg.mxu0
        %v1732 = vmax.f32 %v1702, 0.0
        %v1733 = vmax.f32 %v1705, 0.0
        %v1734 = vmax.f32 %v1710, 0.0
        %v1735 = vmax.f32 %v1713, 0.0
        %v1736 = vmax.f32 %v1718, 0.0
        %v1737 = vmax.f32 %v1721, 0.0
        %v1738 = vmax.f32 %v1726, 0.0
        %v1739 = vmax.f32 %v1729, 0.0
        %v1740 = vpack.c.bf16 %v1733, %v1732
        %v1741 = vpack.c.bf16 %v1735, %v1734
        %v1742 = vpack.c.bf16 %v1737, %v1736
        %v1743 = vpack.c.bf16 %v1739, %v1738
        %v1744 = vlaneseq
        %v1745 = vshrl.u32 %v1744, 7
        %v1746 = vsub.s32 0, %v1745
        %v1747 = vrot.slane %v1569, %v1746
        %v1752 = vunpack.c.l.b16 %v1564
        %v1753 = vunpack.c.l.b16 %v1565
        %v1754 = vunpack.c.l.b16 %v1566
        %v1755 = vunpack.c.l.b16 %v1567
        %v1756 = vpack.c.b16 %v1753, %v1752
        %v1757 = vpack.c.b16 %v1755, %v1754
        %v1761 = vsel %vm492, %v1740, 0
        %v1764 = vsel %vm492, %v1741, 0
        %v1767 = vsel %vm492, %v1742, 0
        %v1770 = vsel %vm492, %v1743, 0
        %1772 = vmatprep.subr.bf16.mxu0 0
        %1773 = vmatpush1.bf16.msra.mxu0 0
        %1774 = vmatprep.subr.bf16.mxu0 0
        %1775 = vmatpush1.bf16.msra.mxu0 0
        %1776 = vmatprep.subr.bf16.mxu0 0
        %1777 = vmatpush1.bf16.msra.mxu0 0
        %1778 = vmatprep.subr.bf16.mxu0 0
        %1779 = vmatpush1.bf16.msra.mxu0 0
        %1780 = vmatprep.subr.bf16.mxu0 0
        %1781 = vmatpush1.bf16.msra.mxu0 0
        %1782 = vmatprep.subr.bf16.mxu0 0
        %1783 = vmatpush1.bf16.msra.mxu0 0
        %1784 = vmatprep.subr.bf16.mxu0 0
        %1785 = vmatpush1.bf16.msra.mxu0 %v1757
        %1786 = vmatprep.subr.bf16.mxu0 0
        %1787 = vmatpush1.bf16.msra.mxu0 %v1756
        %1788 = vmatprep.subr.bf16.mxu0 0
        %1789 = vmatpush2.bf16.msra.mxu0 0
        %1790 = vmatprep.subr.bf16.mxu0 0
        %1791 = vmatpush2.bf16.msra.mxu0 0
        %1792 = vmatprep.subr.bf16.mxu0 0
        %1793 = vmatpush2.bf16.msra.mxu0 0
        %1794 = vmatprep.subr.bf16.mxu0 0
        %1795 = vmatpush2.bf16.msra.mxu0 0
        %1796 = vmatprep.subr.bf16.mxu0 0
        %1797 = vmatpush2.bf16.msra.mxu0 0
        %1798 = vmatprep.subr.bf16.mxu0 0
        %1799 = vmatpush2.bf16.msra.mxu0 0
        %1800 = vmatprep.subr.bf16.mxu0 0
        %1801 = vmatpush2.bf16.msra.mxu0 0
        %1802 = vmatprep.subr.bf16.mxu0 0
        %1803 = vmatpush2.bf16.msra.mxu0 0
        %1804 = vmatprep.mubr.bf16.mxu0 0
        %1805 = vmatmul.mubr.bf16.gmra.mxu0 %v1761
        %v1806 = vpop.f32.mrf.mxu0
        %v1807 = vadd.f32 %v1747, %v1806
        %v1808 = vpop.f32.mrf.mxu0
        %v1809 = vpop.f32.mrf.mxu0
        %v1810 = vadd.f32 %v1747, %v1809
        %v1811 = vpop.f32.mrf.mxu0
        %1812 = vmatprep.mubr.bf16.mxu0 0
        %1813 = vmatmul.mubr.bf16.gmra.mxu0 %v1764
        %v1814 = vpop.f32.mrf.mxu0
        %v1815 = vadd.f32 %v1747, %v1814
        %v1816 = vpop.f32.mrf.mxu0
        %v1817 = vpop.f32.mrf.mxu0
        %v1818 = vadd.f32 %v1747, %v1817
        %v1819 = vpop.f32.mrf.mxu0
        %1820 = vmatprep.mubr.bf16.mxu0 0
        %1821 = vmatmul.mubr.bf16.gmra.mxu0 %v1767
        %v1822 = vpop.f32.mrf.mxu0
        %v1823 = vadd.f32 %v1747, %v1822
        %v1824 = vpop.f32.mrf.mxu0
        %v1825 = vpop.f32.mrf.mxu0
        %v1826 = vadd.f32 %v1747, %v1825
        %v1827 = vpop.f32.mrf.mxu0
        %1828 = vmatprep.mubr.bf16.mxu0 0
        %1829 = vmatmul.mubr.bf16.gmra.mxu0 %v1770
        %v1830 = vpop.f32.mrf.mxu0
        %v1831 = vadd.f32 %v1747, %v1830
        %v1832 = vpop.f32.mrf.mxu0
        %v1833 = vpop.f32.mrf.mxu0
        %v1834 = vadd.f32 %v1747, %v1833
        %v1835 = vpop.f32.mrf.mxu0
        %1836 = vdwg.mxu0
        %v1837 = vmax.f32 %v1807, 0.0
        %v1838 = vmax.f32 %v1810, 0.0
        %v1839 = vmax.f32 %v1815, 0.0
        %v1840 = vmax.f32 %v1818, 0.0
        %v1841 = vmax.f32 %v1823, 0.0
        %v1842 = vmax.f32 %v1826, 0.0
        %v1843 = vmax.f32 %v1831, 0.0
        %v1844 = vmax.f32 %v1834, 0.0
        %v1845 = vpack.c.bf16 %v1838, %v1837
        %v1846 = vpack.c.bf16 %v1840, %v1839
        %v1847 = vpack.c.bf16 %v1842, %v1841
        %v1848 = vpack.c.bf16 %v1844, %v1843
        %s1849 = scalar_lea.vmem %s5, 48
        %v1850 = vld [vmem:[%s1849] sm:$0xf]
        %v1851 = vld [vmem:[%s1849 + $0x4] sm:$0xf]
        %v1852 = vld [vmem:[%s1849 + $0x8] sm:$0xf]
        %v1853 = vld [vmem:[%s1849 + $0xc] sm:$0xf]
        %v1858 = vunpack.c.l.b16 %v1850
        %v1859 = vunpack.c.l.b16 %v1851
        %v1860 = vunpack.c.l.b16 %v1852
        %v1861 = vunpack.c.l.b16 %v1853
        %v1862 = vpack.c.b16 %v1859, %v1858
        %v1863 = vpack.c.b16 %v1861, %v1860
        %v1867 = vsel %vm492, %v1845, 0
        %v1870 = vsel %vm492, %v1846, 0
        %v1873 = vsel %vm492, %v1847, 0
        %v1876 = vsel %vm492, %v1848, 0
        %1878 = vmatprep.subr.bf16.mxu0 0
        %1879 = vmatpush1.bf16.msra.mxu0 0
        %1880 = vmatprep.subr.bf16.mxu0 0
        %1881 = vmatpush1.bf16.msra.mxu0 0
        %1882 = vmatprep.subr.bf16.mxu0 0
        %1883 = vmatpush1.bf16.msra.mxu0 0
        %1884 = vmatprep.subr.bf16.mxu0 0
        %1885 = vmatpush1.bf16.msra.mxu0 0
        %1886 = vmatprep.subr.bf16.mxu0 0
        %1887 = vmatpush1.bf16.msra.mxu0 0
        %1888 = vmatprep.subr.bf16.mxu0 0
        %1889 = vmatpush1.bf16.msra.mxu0 0
        %1890 = vmatprep.subr.bf16.mxu0 0
        %1891 = vmatpush1.bf16.msra.mxu0 %v1863
        %1892 = vmatprep.subr.bf16.mxu0 0
        %1893 = vmatpush1.bf16.msra.mxu0 %v1862
        %1894 = vmatprep.subr.bf16.mxu0 0
        %1895 = vmatpush2.bf16.msra.mxu0 0
        %1896 = vmatprep.subr.bf16.mxu0 0
        %1897 = vmatpush2.bf16.msra.mxu0 0
        %1898 = vmatprep.subr.bf16.mxu0 0
        %1899 = vmatpush2.bf16.msra.mxu0 0
        %1900 = vmatprep.subr.bf16.mxu0 0
        %1901 = vmatpush2.bf16.msra.mxu0 0
        %1902 = vmatprep.subr.bf16.mxu0 0
        %1903 = vmatpush2.bf16.msra.mxu0 0
        %1904 = vmatprep.subr.bf16.mxu0 0
        %1905 = vmatpush2.bf16.msra.mxu0 0
        %1906 = vmatprep.subr.bf16.mxu0 0
        %1907 = vmatpush2.bf16.msra.mxu0 0
        %1908 = vmatprep.subr.bf16.mxu0 0
        %1909 = vmatpush2.bf16.msra.mxu0 0
        %1910 = vmatprep.mubr.bf16.mxu0 0
        %1911 = vmatmul.mubr.bf16.gmra.mxu0 %v1867
        %v1912 = vpop.f32.mrf.mxu0
        %v1913 = vadd.f32 0.0, %v1912
        %v1914 = vpop.f32.mrf.mxu0
        %v1915 = vpop.f32.mrf.mxu0
        %v1916 = vadd.f32 0.0, %v1915
        %v1917 = vpop.f32.mrf.mxu0
        %1918 = vmatprep.mubr.bf16.mxu0 0
        %1919 = vmatmul.mubr.bf16.gmra.mxu0 %v1870
        %v1920 = vpop.f32.mrf.mxu0
        %v1921 = vadd.f32 0.0, %v1920
        %v1922 = vpop.f32.mrf.mxu0
        %v1923 = vpop.f32.mrf.mxu0
        %v1924 = vadd.f32 0.0, %v1923
        %v1925 = vpop.f32.mrf.mxu0
        %1926 = vmatprep.mubr.bf16.mxu0 0
        %1927 = vmatmul.mubr.bf16.gmra.mxu0 %v1873
        %v1928 = vpop.f32.mrf.mxu0
        %v1929 = vadd.f32 0.0, %v1928
        %v1930 = vpop.f32.mrf.mxu0
        %v1931 = vpop.f32.mrf.mxu0
        %v1932 = vadd.f32 0.0, %v1931
        %v1933 = vpop.f32.mrf.mxu0
        %1934 = vmatprep.mubr.bf16.mxu0 0
        %1935 = vmatmul.mubr.bf16.gmra.mxu0 %v1876
        %v1936 = vpop.f32.mrf.mxu0
        %v1937 = vadd.f32 0.0, %v1936
        %v1938 = vpop.f32.mrf.mxu0
        %v1939 = vpop.f32.mrf.mxu0
        %v1940 = vadd.f32 0.0, %v1939
        %v1941 = vpop.f32.mrf.mxu0
        %1942 = vdwg.mxu0
        %v1943 = vadd.f32 %v1550, %v1913
        %v1944 = vadd.f32 %v1551, %v1916
        %v1945 = vadd.f32 %v1552, %v1921
        %v1946 = vadd.f32 %v1553, %v1924
        %v1947 = vadd.f32 %v1554, %v1929
        %v1948 = vadd.f32 %v1555, %v1932
        %v1949 = vadd.f32 %v1556, %v1937
        %v1950 = vadd.f32 %v1557, %v1940
        %s1951 = scalar_lea.vmem %s3, 128
        %v1952 = vld [vmem:[%s1951] sm:$0xf]
        %v1953 = vld [vmem:[%s1951 + $0x4] sm:$0xf]
        %v1954 = vld [vmem:[%s1951 + $0x8] sm:$0xf]
        %v1955 = vld [vmem:[%s1951 + $0xc] sm:$0xf]
        %s1956 = scalar_lea.vmem %s3, 144
        %v1957 = vld [vmem:[%s1956] sm:$0xf]
        %v1958 = vld [vmem:[%s1956 + $0x4] sm:$0xf]
        %v1959 = vld [vmem:[%s1956 + $0x8] sm:$0xf]
        %v1960 = vld [vmem:[%s1956 + $0xc] sm:$0xf]
        %v1961 = vld [vmem:[#allocation5 + $0x8] sm:$0x1]
        %v1962 = vld [vmem:[#allocation5 + $0x9] sm:$0x1]
        %1963 = vmatprep.subr.bf16.mxu0 0
        %1964 = vmatpush1.bf16.msra.mxu0 0
        %1965 = vmatprep.subr.bf16.mxu0 0
        %1966 = vmatpush1.bf16.msra.mxu0 0
        %1967 = vmatprep.subr.bf16.mxu0 0
        %1968 = vmatpush1.bf16.msra.mxu0 0
        %1969 = vmatprep.subr.bf16.mxu0 0
        %1970 = vmatpush1.bf16.msra.mxu0 0
        %1971 = vmatprep.subr.bf16.mxu0 0
        %1972 = vmatpush1.bf16.msra.mxu0 %v1848
        %1973 = vmatprep.subr.bf16.mxu0 0
        %1974 = vmatpush1.bf16.msra.mxu0 %v1847
        %1975 = vmatprep.subr.bf16.mxu0 0
        %1976 = vmatpush1.bf16.msra.mxu0 %v1846
        %1977 = vmatprep.subr.bf16.mxu0 0
        %1978 = vmatpush1.bf16.msra.mxu0 %v1845
        %1979 = vmatprep.subr.bf16.mxu0 0
        %1980 = vmatpush2.bf16.msra.mxu0 0
        %1981 = vmatprep.subr.bf16.mxu0 0
        %1982 = vmatpush2.bf16.msra.mxu0 0
        %1983 = vmatprep.subr.bf16.mxu0 0
        %1984 = vmatpush2.bf16.msra.mxu0 0
        %1985 = vmatprep.subr.bf16.mxu0 0
        %1986 = vmatpush2.bf16.msra.mxu0 0
        %1987 = vmatprep.subr.bf16.mxu0 0
        %1988 = vmatpush2.bf16.msra.mxu0 0
        %1989 = vmatprep.subr.bf16.mxu0 0
        %1990 = vmatpush2.bf16.msra.mxu0 0
        %1991 = vmatprep.subr.bf16.mxu0 0
        %1992 = vmatpush2.bf16.msra.mxu0 0
        %1993 = vmatprep.subr.bf16.mxu0 0
        %1994 = vmatpush2.bf16.msra.mxu0 0
        %1995 = vmatprep.mubr.bf16.mxu0 0
        %1996 = vmatmul.mubr.bf16.gmra.mxu0 %v396
        %v1997 = vpop.f32.mrf.mxu0
        %v1998 = vadd.f32 0.0, %v1997
        %v1999 = vpop.f32.mrf.mxu0
        %v2000 = vpop.f32.mrf.mxu0
        %v2001 = vadd.f32 0.0, %v2000
        %v2002 = vpop.f32.mrf.mxu0
        %2003 = vmatprep.mubr.bf16.mxu0 0
        %2004 = vmatmul.mubr.bf16.gmra.mxu0 %v399
        %v2005 = vpop.f32.mrf.mxu0
        %v2006 = vadd.f32 0.0, %v2005
        %v2007 = vpop.f32.mrf.mxu0
        %v2008 = vpop.f32.mrf.mxu0
        %v2009 = vadd.f32 0.0, %v2008
        %v2010 = vpop.f32.mrf.mxu0
        %2011 = vmatprep.mubr.bf16.mxu0 0
        %2012 = vmatmul.mubr.bf16.gmra.mxu0 %v402
        %v2013 = vpop.f32.mrf.mxu0
        %v2014 = vadd.f32 0.0, %v2013
        %v2015 = vpop.f32.mrf.mxu0
        %v2016 = vpop.f32.mrf.mxu0
        %v2017 = vadd.f32 0.0, %v2016
        %v2018 = vpop.f32.mrf.mxu0
        %2019 = vmatprep.mubr.bf16.mxu0 0
        %2020 = vmatmul.mubr.bf16.gmra.mxu0 %v405
        %v2021 = vpop.f32.mrf.mxu0
        %v2022 = vadd.f32 0.0, %v2021
        %v2023 = vpop.f32.mrf.mxu0
        %v2024 = vpop.f32.mrf.mxu0
        %v2025 = vadd.f32 0.0, %v2024
        %v2026 = vpop.f32.mrf.mxu0
        %2027 = vdwg.mxu0
        %v2028 = vpack.c.bf16 %v2001, %v1998
        %v2029 = vpack.c.bf16 %v2009, %v2006
        %v2030 = vpack.c.bf16 %v2017, %v2014
        %v2031 = vpack.c.bf16 %v2025, %v2022
        %v2032 = vlaneseq
        %v2033 = vshrl.u32 %v2032, 7
        %v2034 = vsub.s32 0, %v2033
        %v2035 = vrot.slane %v1961, %v2034
        %v2040 = vunpack.c.l.b16 %v1952
        %v2041 = vunpack.c.l.b16 %v1953
        %v2042 = vunpack.c.l.b16 %v1954
        %v2043 = vunpack.c.l.b16 %v1955
        %v2044 = vpack.c.b16 %v2041, %v2040
        %v2045 = vpack.c.b16 %v2043, %v2042
        %v2049 = vsel %vm492, %v2028, 0
        %v2052 = vsel %vm492, %v2029, 0
        %v2055 = vsel %vm492, %v2030, 0
        %v2058 = vsel %vm492, %v2031, 0
        %2060 = vmatprep.subr.bf16.mxu0 0
        %2061 = vmatpush1.bf16.msra.mxu0 0
        %2062 = vmatprep.subr.bf16.mxu0 0
        %2063 = vmatpush1.bf16.msra.mxu0 0
        %2064 = vmatprep.subr.bf16.mxu0 0
        %2065 = vmatpush1.bf16.msra.mxu0 0
        %2066 = vmatprep.subr.bf16.mxu0 0
        %2067 = vmatpush1.bf16.msra.mxu0 0
        %2068 = vmatprep.subr.bf16.mxu0 0
        %2069 = vmatpush1.bf16.msra.mxu0 0
        %2070 = vmatprep.subr.bf16.mxu0 0
        %2071 = vmatpush1.bf16.msra.mxu0 0
        %2072 = vmatprep.subr.bf16.mxu0 0
        %2073 = vmatpush1.bf16.msra.mxu0 %v2045
        %2074 = vmatprep.subr.bf16.mxu0 0
        %2075 = vmatpush1.bf16.msra.mxu0 %v2044
        %2076 = vmatprep.subr.bf16.mxu0 0
        %2077 = vmatpush2.bf16.msra.mxu0 0
        %2078 = vmatprep.subr.bf16.mxu0 0
        %2079 = vmatpush2.bf16.msra.mxu0 0
        %2080 = vmatprep.subr.bf16.mxu0 0
        %2081 = vmatpush2.bf16.msra.mxu0 0
        %2082 = vmatprep.subr.bf16.mxu0 0
        %2083 = vmatpush2.bf16.msra.mxu0 0
        %2084 = vmatprep.subr.bf16.mxu0 0
        %2085 = vmatpush2.bf16.msra.mxu0 0
        %2086 = vmatprep.subr.bf16.mxu0 0
        %2087 = vmatpush2.bf16.msra.mxu0 0
        %2088 = vmatprep.subr.bf16.mxu0 0
        %2089 = vmatpush2.bf16.msra.mxu0 0
        %2090 = vmatprep.subr.bf16.mxu0 0
        %2091 = vmatpush2.bf16.msra.mxu0 0
        %2092 = vmatprep.mubr.bf16.mxu0 0
        %2093 = vmatmul.mubr.bf16.gmra.mxu0 %v2049
        %v2094 = vpop.f32.mrf.mxu0
        %v2095 = vadd.f32 %v2035, %v2094
        %v2096 = vpop.f32.mrf.mxu0
        %v2097 = vpop.f32.mrf.mxu0
        %v2098 = vadd.f32 %v2035, %v2097
        %v2099 = vpop.f32.mrf.mxu0
        %2100 = vmatprep.mubr.bf16.mxu0 0
        %2101 = vmatmul.mubr.bf16.gmra.mxu0 %v2052
        %v2102 = vpop.f32.mrf.mxu0
        %v2103 = vadd.f32 %v2035, %v2102
        %v2104 = vpop.f32.mrf.mxu0
        %v2105 = vpop.f32.mrf.mxu0
        %v2106 = vadd.f32 %v2035, %v2105
        %v2107 = vpop.f32.mrf.mxu0
        %2108 = vmatprep.mubr.bf16.mxu0 0
        %2109 = vmatmul.mubr.bf16.gmra.mxu0 %v2055
        %v2110 = vpop.f32.mrf.mxu0
        %v2111 = vadd.f32 %v2035, %v2110
        %v2112 = vpop.f32.mrf.mxu0
        %v2113 = vpop.f32.mrf.mxu0
        %v2114 = vadd.f32 %v2035, %v2113
        %v2115 = vpop.f32.mrf.mxu0
        %2116 = vmatprep.mubr.bf16.mxu0 0
        %2117 = vmatmul.mubr.bf16.gmra.mxu0 %v2058
        %v2118 = vpop.f32.mrf.mxu0
        %v2119 = vadd.f32 %v2035, %v2118
        %v2120 = vpop.f32.mrf.mxu0
        %v2121 = vpop.f32.mrf.mxu0
        %v2122 = vadd.f32 %v2035, %v2121
        %v2123 = vpop.f32.mrf.mxu0
        %2124 = vdwg.mxu0
        %v2125 = vmax.f32 %v2095, 0.0
        %v2126 = vmax.f32 %v2098, 0.0
        %v2127 = vmax.f32 %v2103, 0.0
        %v2128 = vmax.f32 %v2106, 0.0
        %v2129 = vmax.f32 %v2111, 0.0
        %v2130 = vmax.f32 %v2114, 0.0
        %v2131 = vmax.f32 %v2119, 0.0
        %v2132 = vmax.f32 %v2122, 0.0
        %v2133 = vpack.c.bf16 %v2126, %v2125
        %v2134 = vpack.c.bf16 %v2128, %v2127
        %v2135 = vpack.c.bf16 %v2130, %v2129
        %v2136 = vpack.c.bf16 %v2132, %v2131
        %v2137 = vlaneseq
        %v2138 = vshrl.u32 %v2137, 7
        %v2139 = vsub.s32 0, %v2138
        %v2140 = vrot.slane %v1962, %v2139
        %v2145 = vunpack.c.l.b16 %v1957
        %v2146 = vunpack.c.l.b16 %v1958
        %v2147 = vunpack.c.l.b16 %v1959
        %v2148 = vunpack.c.l.b16 %v1960
        %v2149 = vpack.c.b16 %v2146, %v2145
        %v2150 = vpack.c.b16 %v2148, %v2147
        %v2154 = vsel %vm492, %v2133, 0
        %v2157 = vsel %vm492, %v2134, 0
        %v2160 = vsel %vm492, %v2135, 0
        %v2163 = vsel %vm492, %v2136, 0
        %2165 = vmatprep.subr.bf16.mxu0 0
        %2166 = vmatpush1.bf16.msra.mxu0 0
        %2167 = vmatprep.subr.bf16.mxu0 0
        %2168 = vmatpush1.bf16.msra.mxu0 0
        %2169 = vmatprep.subr.bf16.mxu0 0
        %2170 = vmatpush1.bf16.msra.mxu0 0
        %2171 = vmatprep.subr.bf16.mxu0 0
        %2172 = vmatpush1.bf16.msra.mxu0 0
        %2173 = vmatprep.subr.bf16.mxu0 0
        %2174 = vmatpush1.bf16.msra.mxu0 0
        %2175 = vmatprep.subr.bf16.mxu0 0
        %2176 = vmatpush1.bf16.msra.mxu0 0
        %2177 = vmatprep.subr.bf16.mxu0 0
        %2178 = vmatpush1.bf16.msra.mxu0 %v2150
        %2179 = vmatprep.subr.bf16.mxu0 0
        %2180 = vmatpush1.bf16.msra.mxu0 %v2149
        %2181 = vmatprep.subr.bf16.mxu0 0
        %2182 = vmatpush2.bf16.msra.mxu0 0
        %2183 = vmatprep.subr.bf16.mxu0 0
        %2184 = vmatpush2.bf16.msra.mxu0 0
        %2185 = vmatprep.subr.bf16.mxu0 0
        %2186 = vmatpush2.bf16.msra.mxu0 0
        %2187 = vmatprep.subr.bf16.mxu0 0
        %2188 = vmatpush2.bf16.msra.mxu0 0
        %2189 = vmatprep.subr.bf16.mxu0 0
        %2190 = vmatpush2.bf16.msra.mxu0 0
        %2191 = vmatprep.subr.bf16.mxu0 0
        %2192 = vmatpush2.bf16.msra.mxu0 0
        %2193 = vmatprep.subr.bf16.mxu0 0
        %2194 = vmatpush2.bf16.msra.mxu0 0
        %2195 = vmatprep.subr.bf16.mxu0 0
        %2196 = vmatpush2.bf16.msra.mxu0 0
        %2197 = vmatprep.mubr.bf16.mxu0 0
        %2198 = vmatmul.mubr.bf16.gmra.mxu0 %v2154
        %v2199 = vpop.f32.mrf.mxu0
        %v2200 = vadd.f32 %v2140, %v2199
        %v2201 = vpop.f32.mrf.mxu0
        %v2202 = vpop.f32.mrf.mxu0
        %v2203 = vadd.f32 %v2140, %v2202
        %v2204 = vpop.f32.mrf.mxu0
        %2205 = vmatprep.mubr.bf16.mxu0 0
        %2206 = vmatmul.mubr.bf16.gmra.mxu0 %v2157
        %v2207 = vpop.f32.mrf.mxu0
        %v2208 = vadd.f32 %v2140, %v2207
        %v2209 = vpop.f32.mrf.mxu0
        %v2210 = vpop.f32.mrf.mxu0
        %v2211 = vadd.f32 %v2140, %v2210
        %v2212 = vpop.f32.mrf.mxu0
        %2213 = vmatprep.mubr.bf16.mxu0 0
        %2214 = vmatmul.mubr.bf16.gmra.mxu0 %v2160
        %v2215 = vpop.f32.mrf.mxu0
        %v2216 = vadd.f32 %v2140, %v2215
        %v2217 = vpop.f32.mrf.mxu0
        %v2218 = vpop.f32.mrf.mxu0
        %v2219 = vadd.f32 %v2140, %v2218
        %v2220 = vpop.f32.mrf.mxu0
        %2221 = vmatprep.mubr.bf16.mxu0 0
        %2222 = vmatmul.mubr.bf16.gmra.mxu0 %v2163
        %v2223 = vpop.f32.mrf.mxu0
        %v2224 = vadd.f32 %v2140, %v2223
        %v2225 = vpop.f32.mrf.mxu0
        %v2226 = vpop.f32.mrf.mxu0
        %v2227 = vadd.f32 %v2140, %v2226
        %v2228 = vpop.f32.mrf.mxu0
        %2229 = vdwg.mxu0
        %v2230 = vmax.f32 %v2200, 0.0
        %v2231 = vmax.f32 %v2203, 0.0
        %v2232 = vmax.f32 %v2208, 0.0
        %v2233 = vmax.f32 %v2211, 0.0
        %v2234 = vmax.f32 %v2216, 0.0
        %v2235 = vmax.f32 %v2219, 0.0
        %v2236 = vmax.f32 %v2224, 0.0
        %v2237 = vmax.f32 %v2227, 0.0
        %v2238 = vpack.c.bf16 %v2231, %v2230
        %v2239 = vpack.c.bf16 %v2233, %v2232
        %v2240 = vpack.c.bf16 %v2235, %v2234
        %v2241 = vpack.c.bf16 %v2237, %v2236
        %s2242 = scalar_lea.vmem %s5, 64
        %v2243 = vld [vmem:[%s2242] sm:$0xf]
        %v2244 = vld [vmem:[%s2242 + $0x4] sm:$0xf]
        %v2245 = vld [vmem:[%s2242 + $0x8] sm:$0xf]
        %v2246 = vld [vmem:[%s2242 + $0xc] sm:$0xf]
        %v2251 = vunpack.c.l.b16 %v2243
        %v2252 = vunpack.c.l.b16 %v2244
        %v2253 = vunpack.c.l.b16 %v2245
        %v2254 = vunpack.c.l.b16 %v2246
        %v2255 = vpack.c.b16 %v2252, %v2251
        %v2256 = vpack.c.b16 %v2254, %v2253
        %v2260 = vsel %vm492, %v2238, 0
        %v2263 = vsel %vm492, %v2239, 0
        %v2266 = vsel %vm492, %v2240, 0
        %v2269 = vsel %vm492, %v2241, 0
        %2271 = vmatprep.subr.bf16.mxu0 0
        %2272 = vmatpush1.bf16.msra.mxu0 0
        %2273 = vmatprep.subr.bf16.mxu0 0
        %2274 = vmatpush1.bf16.msra.mxu0 0
        %2275 = vmatprep.subr.bf16.mxu0 0
        %2276 = vmatpush1.bf16.msra.mxu0 0
        %2277 = vmatprep.subr.bf16.mxu0 0
        %2278 = vmatpush1.bf16.msra.mxu0 0
        %2279 = vmatprep.subr.bf16.mxu0 0
        %2280 = vmatpush1.bf16.msra.mxu0 0
        %2281 = vmatprep.subr.bf16.mxu0 0
        %2282 = vmatpush1.bf16.msra.mxu0 0
        %2283 = vmatprep.subr.bf16.mxu0 0
        %2284 = vmatpush1.bf16.msra.mxu0 %v2256
        %2285 = vmatprep.subr.bf16.mxu0 0
        %2286 = vmatpush1.bf16.msra.mxu0 %v2255
        %2287 = vmatprep.subr.bf16.mxu0 0
        %2288 = vmatpush2.bf16.msra.mxu0 0
        %2289 = vmatprep.subr.bf16.mxu0 0
        %2290 = vmatpush2.bf16.msra.mxu0 0
        %2291 = vmatprep.subr.bf16.mxu0 0
        %2292 = vmatpush2.bf16.msra.mxu0 0
        %2293 = vmatprep.subr.bf16.mxu0 0
        %2294 = vmatpush2.bf16.msra.mxu0 0
        %2295 = vmatprep.subr.bf16.mxu0 0
        %2296 = vmatpush2.bf16.msra.mxu0 0
        %2297 = vmatprep.subr.bf16.mxu0 0
        %2298 = vmatpush2.bf16.msra.mxu0 0
        %2299 = vmatprep.subr.bf16.mxu0 0
        %2300 = vmatpush2.bf16.msra.mxu0 0
        %2301 = vmatprep.subr.bf16.mxu0 0
        %2302 = vmatpush2.bf16.msra.mxu0 0
        %2303 = vmatprep.mubr.bf16.mxu0 0
        %2304 = vmatmul.mubr.bf16.gmra.mxu0 %v2260
        %v2305 = vpop.f32.mrf.mxu0
        %v2306 = vadd.f32 0.0, %v2305
        %v2307 = vpop.f32.mrf.mxu0
        %v2308 = vpop.f32.mrf.mxu0
        %v2309 = vadd.f32 0.0, %v2308
        %v2310 = vpop.f32.mrf.mxu0
        %2311 = vmatprep.mubr.bf16.mxu0 0
        %2312 = vmatmul.mubr.bf16.gmra.mxu0 %v2263
        %v2313 = vpop.f32.mrf.mxu0
        %v2314 = vadd.f32 0.0, %v2313
        %v2315 = vpop.f32.mrf.mxu0
        %v2316 = vpop.f32.mrf.mxu0
        %v2317 = vadd.f32 0.0, %v2316
        %v2318 = vpop.f32.mrf.mxu0
        %2319 = vmatprep.mubr.bf16.mxu0 0
        %2320 = vmatmul.mubr.bf16.gmra.mxu0 %v2266
        %v2321 = vpop.f32.mrf.mxu0
        %v2322 = vadd.f32 0.0, %v2321
        %v2323 = vpop.f32.mrf.mxu0
        %v2324 = vpop.f32.mrf.mxu0
        %v2325 = vadd.f32 0.0, %v2324
        %v2326 = vpop.f32.mrf.mxu0
        %2327 = vmatprep.mubr.bf16.mxu0 0
        %2328 = vmatmul.mubr.bf16.gmra.mxu0 %v2269
        %v2329 = vpop.f32.mrf.mxu0
        %v2330 = vadd.f32 0.0, %v2329
        %v2331 = vpop.f32.mrf.mxu0
        %v2332 = vpop.f32.mrf.mxu0
        %v2333 = vadd.f32 0.0, %v2332
        %v2334 = vpop.f32.mrf.mxu0
        %2335 = vdwg.mxu0
        %v2336 = vadd.f32 %v1943, %v2306
        %v2337 = vadd.f32 %v1944, %v2309
        %v2338 = vadd.f32 %v1945, %v2314
        %v2339 = vadd.f32 %v1946, %v2317
        %v2340 = vadd.f32 %v1947, %v2322
        %v2341 = vadd.f32 %v1948, %v2325
        %v2342 = vadd.f32 %v1949, %v2330
        %v2343 = vadd.f32 %v1950, %v2333
        %v2344 = vld [vmem:[%s269] sm:$0xf]
        %v2345 = vpack.c.bf16 %v2337, %v2336
        %v2346 = vpack.c.bf16 %v2339, %v2338
        %v2347 = vpack.c.bf16 %v2341, %v2340
        %v2348 = vpack.c.bf16 %v2343, %v2342
        %v2350 = vsel %vm394, %v2344, 0
        %2352 = vmatprep.subr.bf16.mxu0 0
        %2353 = vmatpush1.bf16.msra.mxu0 0
        %2354 = vmatprep.subr.bf16.mxu0 0
        %2355 = vmatpush1.bf16.msra.mxu0 0
        %2356 = vmatprep.subr.bf16.mxu0 0
        %2357 = vmatpush1.bf16.msra.mxu0 0
        %2358 = vmatprep.subr.bf16.mxu0 0
        %2359 = vmatpush1.bf16.msra.mxu0 0
        %2360 = vmatprep.subr.bf16.mxu0 0
        %2361 = vmatpush1.bf16.msra.mxu0 %v2348
        %2362 = vmatprep.subr.bf16.mxu0 0
        %2363 = vmatpush1.bf16.msra.mxu0 %v2347
        %2364 = vmatprep.subr.bf16.mxu0 0
        %2365 = vmatpush1.bf16.msra.mxu0 %v2346
        %2366 = vmatprep.subr.bf16.mxu0 0
        %2367 = vmatpush1.bf16.msra.mxu0 %v2345
        %2368 = vmatprep.subr.bf16.mxu0 0
        %2369 = vmatpush2.bf16.msra.mxu0 0
        %2370 = vmatprep.subr.bf16.mxu0 0
        %2371 = vmatpush2.bf16.msra.mxu0 0
        %2372 = vmatprep.subr.bf16.mxu0 0
        %2373 = vmatpush2.bf16.msra.mxu0 0
        %2374 = vmatprep.subr.bf16.mxu0 0
        %2375 = vmatpush2.bf16.msra.mxu0 0
        %2376 = vmatprep.subr.bf16.mxu0 0
        %2377 = vmatpush2.bf16.msra.mxu0 0
        %2378 = vmatprep.subr.bf16.mxu0 0
        %2379 = vmatpush2.bf16.msra.mxu0 0
        %2380 = vmatprep.subr.bf16.mxu0 0
        %2381 = vmatpush2.bf16.msra.mxu0 0
        %2382 = vmatprep.subr.bf16.mxu0 0
        %2383 = vmatpush2.bf16.msra.mxu0 0
        %2384 = vmatprep.mubr.bf16.mxu0 0
        %2385 = vmatmul.mubr.bf16.gmra.mxu0 %v2350
        %v2386 = vpop.f32.mrf.mxu0
        %v2387 = vadd.f32 0.0, %v2386
        %v2388 = vpop.f32.mrf.mxu0
        %v2389 = vpop.f32.mrf.mxu0
        %v2390 = vpop.f32.mrf.mxu0
        %2391 = vdwg.mxu0
        %v2392 = vxor.u32 %v2387, 2147483648
        %v2393 = vmul.f32 %v2392, 1.442695
        %v2394 = vpow.pop %v2393
        %v2395 = vadd.f32 %v2394, 1.0
        %v2396 = vrcp.pop %v2395
        %v2397 = vmul.f32 1.0, %v2396
        %vm2398 = vcmask 64512
        %2399 = vst.msk [vmem:[%s311] sm:$0xff] %vm2398, %v2397
        %s2400 = sand.u32 %s173, 1
        %s2401 = scalar_lea.sflag [#allocation4], %s2400
        %s2402 = sand.u32 %s173, 1
        %s2403 = smul.addr %s2402, 8
        %s2404 = scalar_lea.vmem [#allocation7], %s2403
        // Predicated region
        $region53: #{tpu_custom_call.1} parent=43 // pred_check
          %p2405 = pneg %p183
        $region54: #{tpu_custom_call.1} parent=43 // pred_check_branch
          %2407 = sbr.rel (%p2405) target = $region56
        $region55: #{tpu_custom_call.1} parent=43 // pred_region
          %s2409 = ssub.s32 128, 128
          %2410 = vsyncadd %s2401, %s2409
          %s2411 = smul.addr %s24, 128
          %s2412 = scalar_lea.hbm %s6, %s2411
          %s2414 = sshll.u32 %s2404, 4
          %s2415 = int_to_ptr.vmem [resolvable:$true] %s2414
          %2417 = dma.vmem_to_hbm [thread:$0]  %s2415, 128, %s2412, %s2401
        $region56: #{tpu_custom_call.1} parent=43 // pred_fallthru
          _
      $region44: #{tpu_custom_call.1} parent=5 // pred_fallthru
        _
      %p2418 = scmp.le.s32.totalorder 2, %s19
      // Predicated region
      $region57: #{tpu_custom_call.1} parent=5 // pred_check
        %p2419 = pneg %p2418
      $region58: #{tpu_custom_call.1} parent=5 // pred_check_branch
        %2421 = sbr.rel (%p2419) target = $region60
      $region59: #{tpu_custom_call.1} parent=5 // pred_region
        %s2422 = ssub.s32 %s19, 2
        // Predicated region
        $region61: #{tpu_custom_call.1} parent=59 // pred_check
          %p2423 = pneg %p189
        $region62: #{tpu_custom_call.1} parent=59 // pred_check_branch
          %2425 = sbr.rel (%p2423) target = $region64
        $region63: #{tpu_custom_call.1} parent=59 // pred_region
          %s2426 = sand.u32 %s174, 1
          %s2427 = scalar_lea.sflag [#allocation4], %s2426
          %s2428 = sand.u32 %s174, 1
          %s2429 = smul.addr %s2428, 8
          %s2430 = scalar_lea.vmem [#allocation7], %s2429
          %2431 = dma.done %s2427, 128
        $region64: #{tpu_custom_call.1} parent=59 // pred_fallthru
          _
      $region60: #{tpu_custom_call.1} parent=5 // pred_fallthru
        _
    $region6: #{tpu_custom_call.1} parent=1 // loop_footer
      %s23 = sadd.s32 1, %s19
    $region7: #{tpu_custom_call.1} parent=1 // loop_footer_branch
      %18 = sbr.rel target = $region3
    $region8: #{tpu_custom_call.1} parent=1 // loop_exit
      _
    %2432 = vsyncpa [#allocation3], 1
    %s2433 = scalar_lea.sflag [#allocation3], 1
    %2434 = vsyncpa %s2433, 1
    %2435 = vsyncpa [#allocation6], 1
    %2436 = vsyncpa [#allocation4], 1
    %s2437 = scalar_lea.sflag [#allocation4], 1
    %2438 = vsyncpa %s2437, 1

</llo_original>
